<compile_context>
chip_gen: v6e
topology: v6e:2x2x1
jax: 0.10.0
libtpu: 0.0.40
codegen_flags: <defaults>
</compile_context>

<pallas_src>
from functools import partial

import jax
import jax.numpy as jnp
from jax.experimental import pallas as pl
from jax.experimental.pallas import tpu as pltpu

ITERS = 3
EPS = 1e-8  # kept for parity with the module; the forward math never uses it


def scouter_attention_kernel(
    x_ref, v_ref, slots0_ref,
    wk_ref, bk_ref,
    wih_ref, whh_ref, bih_ref, bhh_ref,
    out_ref, loss_ref,
    *, scale, loss_status):
    Bb, N, D = x_ref.shape
    S = slots0_ref.shape[0]

    # --- to_k: one (Bb*N, D) @ (D, D) matmul for the whole batch block (bf16 operands when
    # the HBM dtype is bf16, f32 accumulation); fold `scale` into k once. ---
    x2 = x_ref[...].reshape(Bb * N, D)
    k = jnp.dot(x2, wk_ref[...], preferred_element_type=jnp.float32) + bk_ref[...]
    k = (k * scale).reshape(Bb, N, D)                       # f32 (Bb, N, D)

    # Values: single cheap upcast; all downstream math stays f32 (MXU is idle at D=32).
    v = v_ref[...].astype(jnp.float32)                      # (Bb, N, D)

    # GRU weights/biases (f32, grid-invariant blocks -> DMA'd once), fused [r | z | n].
    wih = wih_ref[...]                                       # (D, 3D)
    whh = whh_ref[...]                                       # (D, 3D)
    bih = bih_ref[...]                                       # (1, 3D)
    bhh = bhh_ref[...]                                       # (1, 3D)

    # Per-batch slot state, stacked: (Bb, S, D); broadcast hoisted out of the loop.
    slots = jnp.broadcast_to(slots0_ref[...][None], (Bb, S, D))

    attn = None
    updates = None
    for _ in range(ITERS):                                   # iters = 3, static unrolled loop
        slots_prev = slots                                   # (Bb, S, D)

        # dots[b] = slots[b] @ k[b].T  (contract on d, batch on b, no transpose materialised)
        dots = jax.lax.dot_general(
            slots, k,
            dimension_numbers=(((2,), (2,)), ((0,), (0,))),
            preferred_element_type=jnp.float32)              # (Bb, S, N)

        # dots = dots / dots.sum(j) * dots.sum(i, j)  ==  dots * (total / row_sum)
        # NOTE: no epsilon guard, faithful to the PyTorch module (EPS is defined but unused).
        row_sum = jnp.sum(dots, axis=2, keepdims=True)       # (Bb, S, 1)  (tiny)
        total = jnp.sum(row_sum, axis=1, keepdims=True)      # (Bb, 1, 1)
        dots = dots * (total / row_sum)                      # single full-size multiply

        # attn = softmax over the slot axis * sigmoid(dots)
        m = jnp.max(dots, axis=1, keepdims=True)             # (Bb, 1, N)
        e = jnp.exp(dots - m)
        inv_den = pl.reciprocal(jnp.sum(e, axis=1, keepdims=True), approx=False)  # (Bb,1,N)
        attn = e * inv_den * jax.nn.sigmoid(dots)            # (Bb, S, N)

        # updates[b] = attn[b] @ v[b] / D
        updates = jax.lax.dot_general(
            attn, v,
            dimension_numbers=(((2,), (1,)), ((0,), (0,))),
            preferred_element_type=jnp.float32) * (1.0 / D)  # (Bb, S, D)

        # GRU cell on (Bb*S, D) rows: 2 fused (D, 3D) matmuls instead of 6 tiny ones.
        u2 = updates.reshape(Bb * S, D)
        h2 = slots_prev.reshape(Bb * S, D)
        gi = jnp.dot(u2, wih, preferred_element_type=jnp.float32) + bih   # (Bb*S, 3D)
        gh = jnp.dot(h2, whh, preferred_element_type=jnp.float32) + bhh   # (Bb*S, 3D)
        # Lane-packed gates: one 2D-wide sigmoid (64 lanes) instead of two D-wide ones.
        rz = jax.nn.sigmoid(gi[:, :2 * D] + gh[:, :2 * D])
        r = rz[:, :D]
        z = rz[:, D:]
        n_gate = jnp.tanh(gi[:, 2 * D:] + r * gh[:, 2 * D:])
        slots = ((1.0 - z) * n_gate + z * h2).reshape(Bb, S, D)
        # TODO(synk): if a v7x bundle dump shows EUP/VPU as the binding slot, recompute
        # gi/gh transposed as (3D, Bb*S) so the gate math runs at full 128-lane occupancy.

    # args.fsl == False branch: loss_status * updates.sum(dim=-1)
    out_ref[...] = (loss_status * jnp.sum(updates, axis=2))[None]         # (1, Bb, S)
    # attn = softmax * sigmoid >= 0, so the relu is dropped; per-step partial sum,
    # final mean / power happen in the wrapper.
    loss_ref[...] = jnp.sum(attn.reshape(1, Bb * S, N), axis=(1, 2), keepdims=True)  # (1,1,1)


def _vmem_bytes(block_b, N, D, S, in_itemsize):
    """Coarse per-grid-step VMEM estimate (streamed inputs + params + f32 working set)."""
    stream = 2 * 2 * block_b * N * D * in_itemsize            # x, v: double-buffered
    params = (S * D + D * D + D + 2 * D * 3 * D + 2 * 3 * D) * 4
    work = (2 * block_b * N * D                                # k, v (f32)
            + 4 * block_b * S * N                              # dots / e / attn live values
            + 10 * block_b * S * D) * 4                        # slots, updates, gates
    out = 2 * (block_b * S + 1) * 4
    return stream + params + work + out


def scouter_attention(inputs, inputs_x, params, *, loss_status=1, power=1,
                      block_b=None, hbm_dtype=jnp.bfloat16):
    B, N, D = inputs.shape
    S = params["slots0"].shape[0]
    scale = float(D) ** -0.5

    def cast(a, dt):
        return a if a.dtype == dt else a.astype(dt)

    # Pre-cast the streamed tensors + k-projection weight (the dominant HBM traffic).
    # Biases, slots and the GRU weights stay f32 (all in-kernel elementwise math is f32).
    x_in = cast(inputs, hbm_dtype)
    v_in = cast(inputs_x, hbm_dtype)
    wk_in = cast(params["wk_t"], hbm_dtype)
    itemsize = jnp.dtype(hbm_dtype).itemsize

    vmem_budget = 40 << 20   # conservative across v5e/v6e (128 MiB) and v7x (64 MiB physical)
    if block_b is None:
        # Aim for ~128 stacked rows (block_b * S) in the fused GRU matmuls ...
        block_b = max(1, min(B, 128 // max(S, 1)))
        # ... but keep nb = B // block_b >= 2 so the single "parallel" grid axis can be
        # split across both v7x TensorCores.
        if B >= 2:
            block_b = min(block_b, max(1, B // 2))
    while B % block_b:
        block_b -= 1
    while block_b > 1 and _vmem_bytes(block_b, N, D, S, itemsize) > vmem_budget:
        block_b -= 1
        while B % block_b:
            block_b -= 1
    nb = B // block_b

    # Explicit VMEM limit (v5e's 16 MiB scoped default is the first to reject), capped at
    # v7x's 64 MiB physical VMEM.
    vmem_limit = int(min(max(4 * _vmem_bytes(block_b, N, D, S, itemsize), 16 << 20), 64 << 20))

    kernel = partial(scouter_attention_kernel, scale=scale, loss_status=float(loss_status))

    def rep_spec(shape):
        return pl.BlockSpec(shape, lambda b, _nd=len(shape): (0,) * _nd)

    # TODO(synk): if profiling larger N*D shows exposed input DMA, add
    # pipeline_mode=pl.Buffered(3) to the two streamed input BlockSpecs.
    out3, loss_partial = pl.pallas_call(
        kernel,
        out_shape=(jax.ShapeDtypeStruct((nb, block_b, S), jnp.float32),
                   jax.ShapeDtypeStruct((nb, 1, 1), jnp.float32)),
        grid=(nb,),
        in_specs=[
            pl.BlockSpec((block_b, N, D), lambda b: (b, 0, 0)),   # inputs      (hbm_dtype)
            pl.BlockSpec((block_b, N, D), lambda b: (b, 0, 0)),   # inputs_x    (hbm_dtype)
            rep_spec((S, D)),                                     # initial slots (f32)
            rep_spec((D, D)), rep_spec((1, D)),                   # to_k weight (hbm_dtype) / bias
            rep_spec((D, 3 * D)), rep_spec((D, 3 * D)),           # fused GRU W_ih^T, W_hh^T (f32)
            rep_spec((1, 3 * D)), rep_spec((1, 3 * D)),           # fused GRU b_ih, b_hh (f32)
        ],
        # Block trailing dims equal the array trailing dims -> legal for any block_b / nb.
        out_specs=(pl.BlockSpec((1, block_b, S), lambda b: (b, 0, 0)),
                   pl.BlockSpec((1, 1, 1), lambda b: (b, 0, 0))),
        compiler_params=pltpu.CompilerParams(
            dimension_semantics=("parallel",),
            vmem_limit_bytes=vmem_limit),
    )(x_in, v_in, params["slots0"],
      wk_in, params["bk"],
      params["wih_t"], params["whh_t"],
      params["bih"], params["bhh"])

    out = out3.reshape(B, S)
    # slot_loss = mean(attn) over (b, i, j), raised to `power` (attn >= 0, relu is a no-op)
    slot_loss = (jnp.sum(loss_partial) / float(B * S * N)) ** power
    return out, slot_loss


def make_params(key, num_slots, dim):
    """Deterministic synthetic parameters matching the module's shapes."""
    ks = jax.random.split(key, 8)
    slots_mu = jax.random.normal(ks[0], (1, 1, dim), jnp.float32)
    slots_sigma = jnp.abs(jax.random.normal(ks[1], (1, 1, dim), jnp.float32))
    initial_slots = (slots_mu + slots_sigma
                     * jax.random.normal(ks[2], (1, num_slots, dim), jnp.float32))

    wk = jax.random.normal(ks[3], (dim, dim), jnp.float32) * 0.1   # nn.Linear weight (out, in)
    bk = jax.random.normal(ks[4], (dim,), jnp.float32) * 0.1

    w_ih = jax.random.normal(ks[5], (3 * dim, dim), jnp.float32) * 0.1   # GRU weight_ih_l0 [r;z;n]
    w_hh = jax.random.normal(ks[6], (3 * dim, dim), jnp.float32) * 0.1   # GRU weight_hh_l0 [r;z;n]
    b_all = jax.random.normal(ks[7], (2, 3 * dim), jnp.float32) * 0.1
    b_ih, b_hh = b_all[0], b_all[1]

    return {
        "slots0": initial_slots[0],                 # (S, D)
        "wk_t": wk.T, "bk": bk[None, :],            # pre-transposed Linear
        "wih_t": w_ih.T, "whh_t": w_hh.T,           # fused, pre-transposed GRU weights (D, 3D)
        "bih": b_ih[None, :], "bhh": b_hh[None, :], # fused GRU biases (1, 3D)
    }


def reference(inputs, inputs_x, params, *, loss_status=1, power=1):
    """Pure-JAX re-implementation of the PyTorch forward (fsl=False branch)."""
    B, N, D = inputs.shape
    scale = float(D) ** -0.5
    k = inputs @ params["wk_t"] + params["bk"]
    v = inputs_x
    slots = jnp.broadcast_to(params["slots0"][None], (B,) + params["slots0"].shape)
    attn = updates = None
    for _ in range(ITERS):
        slots_prev = slots
        dots = jnp.einsum('bid,bjd->bij', slots, k) * scale
        row_sum = dots.sum(2, keepdims=True)
        total = dots.sum((1, 2))[:, None, None]
        dots = dots / row_sum * total
        attn = jax.nn.softmax(dots, axis=1) * jax.nn.sigmoid(dots)
        updates = jnp.einsum('bjd,bij->bid', v, attn) / D
        gi = updates @ params["wih_t"] + params["bih"]
        gh = slots_prev @ params["whh_t"] + params["bhh"]
        r = jax.nn.sigmoid(gi[..., :D] + gh[..., :D])
        z = jax.nn.sigmoid(gi[..., D:2 * D] + gh[..., D:2 * D])
        n_gate = jnp.tanh(gi[..., 2 * D:] + r * gh[..., 2 * D:])
        slots = (1.0 - z) * n_gate + z * slots_prev
    out = loss_status * jnp.sum(updates, axis=2)
    slot_loss = jnp.mean(jax.nn.relu(attn)) ** power
    return out, slot_loss


if __name__ == "__main__":
    # Small deterministic config: num_slot=4, slots_per_class=2 -> S=8, dim=32, N=128, B=2
    B, N, D = 2, 128, 32
    NUM_SLOT, SLOTS_PER_CLASS = 4, 2
    S = NUM_SLOT * SLOTS_PER_CLASS

    key = jax.random.PRNGKey(0)
    k_in, k_inx, k_par = jax.random.split(key, 3)
    inputs = jax.random.normal(k_in, (B, N, D), jnp.float32)
    inputs_x = jax.random.normal(k_inx, (B, N, D), jnp.float32)
    params = make_params(k_par, S, D)

    # Strict correctness check against the pure-JAX reference uses the f32 HBM path.
    out, slot_loss = scouter_attention(inputs, inputs_x, params, loss_status=1, power=1,
                                       hbm_dtype=jnp.float32)
    out = jax.block_until_ready(out)
    slot_loss = jax.block_until_ready(slot_loss)

    ref_out, ref_loss = reference(inputs, inputs_x, params, loss_status=1, power=1)
    # The module's un-guarded dots / dots.sum(j) normalisation amplifies ulp-level
    # rounding differences (different matmul blocking, scale folding, mul-by-reciprocal),
    # so compare at a slightly relaxed but still tight tolerance.
    assert jnp.allclose(out, ref_out, rtol=1e-3, atol=1e-3), "output mismatch vs reference"
    assert jnp.allclose(slot_loss, ref_loss, rtol=1e-3, atol=1e-5), "slot_loss mismatch vs reference"

    # Default bf16-HBM path (v5e/v6e/v7x feedback): smoke-test that it lowers and runs.
    # Element-wise / GRU math stays f32; only the streamed inputs, values and the
    # k-projection operands are bf16, so results are close but not 1e-4-tight -> check
    # finiteness here.
    out_bf, loss_bf = scouter_attention(inputs, inputs_x, params, loss_status=1, power=1)
    out_bf = jax.block_until_ready(out_bf)
    loss_bf = jax.block_until_ready(loss_bf)
    assert bool(jnp.all(jnp.isfinite(out_bf))) and bool(jnp.isfinite(loss_bf)), \
        "bf16 path produced non-finite values"

    # TODO(synk): the `vis` branch (min/max normalization + PIL image dump) is host-side I/O
    # and intentionally not implemented in the kernel.
    print("KERNEL_OK")
</pallas_src>

<mosaic_0001>
module attributes {stable_mosaic.version = 11 : i64} {
  func.func @scouter_attention_kernel(%arg0: i32, %arg1: memref<1x128x32xf32, #tpu.memory_space<vmem>>, %arg2: memref<1x128x32xf32, #tpu.memory_space<vmem>>, %arg3: memref<8x32xf32, #tpu.memory_space<vmem>>, %arg4: memref<32x32xf32, #tpu.memory_space<vmem>>, %arg5: memref<1x32xf32, #tpu.memory_space<vmem>>, %arg6: memref<32x96xf32, #tpu.memory_space<vmem>>, %arg7: memref<32x96xf32, #tpu.memory_space<vmem>>, %arg8: memref<1x96xf32, #tpu.memory_space<vmem>>, %arg9: memref<1x96xf32, #tpu.memory_space<vmem>>, %arg10: memref<1x1x8xf32, #tpu.memory_space<vmem>>, %arg11: memref<1x1x1xf32, #tpu.memory_space<vmem>>) attributes {dimension_semantics = [#tpu.dimension_semantics<parallel>], iteration_bounds = array<i64: 2>, scalar_prefetch = 0 : i64, scratch_operands = 0 : i64, tpu.core_type = #tpu.core_type<tc>, window_params = [{transform_indices = @transform_0, window_bounds = array<i64: 1, 128, 32>}, {transform_indices = @transform_1, window_bounds = array<i64: 1, 128, 32>}, {pipeline_mode = #tpu.pipeline_mode<synchronous>, transform_indices = @transform_2, window_bounds = array<i64: 8, 32>}, {pipeline_mode = #tpu.pipeline_mode<synchronous>, transform_indices = @transform_3, window_bounds = array<i64: 32, 32>}, {pipeline_mode = #tpu.pipeline_mode<synchronous>, transform_indices = @transform_4, window_bounds = array<i64: 1, 32>}, {pipeline_mode = #tpu.pipeline_mode<synchronous>, transform_indices = @transform_5, window_bounds = array<i64: 32, 96>}, {pipeline_mode = #tpu.pipeline_mode<synchronous>, transform_indices = @transform_6, window_bounds = array<i64: 32, 96>}, {pipeline_mode = #tpu.pipeline_mode<synchronous>, transform_indices = @transform_7, window_bounds = array<i64: 1, 96>}, {pipeline_mode = #tpu.pipeline_mode<synchronous>, transform_indices = @transform_8, window_bounds = array<i64: 1, 96>}, {transform_indices = @transform_9, window_bounds = array<i64: 1, 1, 8>}, {transform_indices = @transform_10, window_bounds = array<i64: 1, 1, 1>}]} {
    %c0 = arith.constant 0 : index
    %c0_0 = arith.constant 0 : index
    %c0_1 = arith.constant 0 : index
    %0 = vector.load %arg1[%c0, %c0_0, %c0_1] : memref<1x128x32xf32, #tpu.memory_space<vmem>>, vector<1x128x32xf32>
    %1 = vector.shape_cast %0 : vector<1x128x32xf32> to vector<128x32xf32>
    %c0_2 = arith.constant 0 : index
    %c0_3 = arith.constant 0 : index
    %2 = vector.load %arg4[%c0_2, %c0_3] : memref<32x32xf32, #tpu.memory_space<vmem>>, vector<32x32xf32>
    %cst = arith.constant dense<0.000000e+00> : vector<128x32xf32>
    %3 = tpu.matmul %1, %2, %cst {dimension_numbers = #tpu.dot_dimension_numbers<[1], [0], [0], [1], [0, 0, 1, 1], [], []>} : vector<128x32xf32>, vector<32x32xf32>, vector<128x32xf32> -> vector<128x32xf32>
    %c0_4 = arith.constant 0 : index
    %c0_5 = arith.constant 0 : index
    %4 = vector.load %arg5[%c0_4, %c0_5] : memref<1x32xf32, #tpu.memory_space<vmem>>, vector<1x32xf32>
    %5 = vector.broadcast %4 : vector<1x32xf32> to vector<128x32xf32>
    %6 = arith.addf %3, %5 : vector<128x32xf32>
    %cst_6 = arith.constant 0.176776692 : f32
    %7 = vector.broadcast %cst_6 : f32 to vector<128x32xf32>
    %8 = arith.mulf %6, %7 : vector<128x32xf32>
    %9 = vector.shape_cast %8 : vector<128x32xf32> to vector<1x128x32xf32>
    %c0_7 = arith.constant 0 : index
    %c0_8 = arith.constant 0 : index
    %c0_9 = arith.constant 0 : index
    %10 = vector.load %arg2[%c0_7, %c0_8, %c0_9] : memref<1x128x32xf32, #tpu.memory_space<vmem>>, vector<1x128x32xf32>
    %c0_10 = arith.constant 0 : index
    %c0_11 = arith.constant 0 : index
    %11 = vector.load %arg6[%c0_10, %c0_11] : memref<32x96xf32, #tpu.memory_space<vmem>>, vector<32x96xf32>
    %c0_12 = arith.constant 0 : index
    %c0_13 = arith.constant 0 : index
    %12 = vector.load %arg7[%c0_12, %c0_13] : memref<32x96xf32, #tpu.memory_space<vmem>>, vector<32x96xf32>
    %c0_14 = arith.constant 0 : index
    %c0_15 = arith.constant 0 : index
    %13 = vector.load %arg8[%c0_14, %c0_15] : memref<1x96xf32, #tpu.memory_space<vmem>>, vector<1x96xf32>
    %c0_16 = arith.constant 0 : index
    %c0_17 = arith.constant 0 : index
    %14 = vector.load %arg9[%c0_16, %c0_17] : memref<1x96xf32, #tpu.memory_space<vmem>>, vector<1x96xf32>
    %c0_18 = arith.constant 0 : index
    %c0_19 = arith.constant 0 : index
    %15 = vector.load %arg3[%c0_18, %c0_19] : memref<8x32xf32, #tpu.memory_space<vmem>>, vector<8x32xf32>
    %16 = vector.shape_cast %15 : vector<8x32xf32> to vector<1x8x32xf32>
    %cst_20 = arith.constant dense<0.000000e+00> : vector<1x8x128xf32>
    %17 = tpu.matmul %16, %9, %cst_20 {dimension_numbers = #tpu.dot_dimension_numbers<[2], [2], [1], [1], [0, 0, 0, 1, 1, 1], [0], [0]>} : vector<1x8x32xf32>, vector<1x128x32xf32>, vector<1x8x128xf32> -> vector<1x8x128xf32>
    %cst_21 = arith.constant dense<0.000000e+00> : vector<1x8xf32>
    %18 = vector.multi_reduction <add>, %17, %cst_21 [2] : vector<1x8x128xf32> to vector<1x8xf32>
    %19 = vector.shape_cast %18 : vector<1x8xf32> to vector<1x8x1xf32>
    %cst_22 = arith.constant dense<0.000000e+00> : vector<1x1xf32>
    %20 = vector.multi_reduction <add>, %19, %cst_22 [1] : vector<1x8x1xf32> to vector<1x1xf32>
    %21 = vector.shape_cast %20 : vector<1x1xf32> to vector<1x1x1xf32>
    %22 = vector.broadcast %21 : vector<1x1x1xf32> to vector<1x8x1xf32>
    %23 = arith.divf %22, %19 : vector<1x8x1xf32>
    %24 = vector.broadcast %23 : vector<1x8x1xf32> to vector<1x8x128xf32>
    %25 = arith.mulf %17, %24 : vector<1x8x128xf32>
    %cst_23 = arith.constant dense<0xFF800000> : vector<1x128xf32>
    %26 = vector.multi_reduction <maximumf>, %25, %cst_23 [1] : vector<1x8x128xf32> to vector<1x128xf32>
    %27 = vector.shape_cast %26 : vector<1x128xf32> to vector<1x1x128xf32>
    %28 = vector.broadcast %27 : vector<1x1x128xf32> to vector<1x8x128xf32>
    %29 = arith.subf %25, %28 : vector<1x8x128xf32>
    %30 = math.exp %29 : vector<1x8x128xf32>
    %cst_24 = arith.constant dense<0.000000e+00> : vector<1x128xf32>
    %31 = vector.multi_reduction <add>, %30, %cst_24 [1] : vector<1x8x128xf32> to vector<1x128xf32>
    %32 = vector.shape_cast %31 : vector<1x128xf32> to vector<1x1x128xf32>
    %33 = tpu.reciprocal %32 : vector<1x1x128xf32> -> vector<1x1x128xf32>
    %34 = vector.broadcast %33 : vector<1x1x128xf32> to vector<1x8x128xf32>
    %35 = arith.mulf %30, %34 : vector<1x8x128xf32>
    %36 = arith.negf %25 : vector<1x8x128xf32>
    %37 = math.exp %36 : vector<1x8x128xf32>
    %cst_25 = arith.constant 1.000000e+00 : f32
    %38 = vector.broadcast %cst_25 : f32 to vector<1x8x128xf32>
    %39 = arith.addf %38, %37 : vector<1x8x128xf32>
    %40 = arith.divf %38, %39 : vector<1x8x128xf32>
    %41 = arith.mulf %35, %40 : vector<1x8x128xf32>
    %cst_26 = arith.constant dense<0.000000e+00> : vector<1x8x32xf32>
    %42 = tpu.matmul %41, %10, %cst_26 {dimension_numbers = #tpu.dot_dimension_numbers<[2], [1], [1], [2], [0, 0, 0, 1, 1, 2], [0], [0]>} : vector<1x8x128xf32>, vector<1x128x32xf32>, vector<1x8x32xf32> -> vector<1x8x32xf32>
    %cst_27 = arith.constant 3.125000e-02 : f32
    %43 = vector.broadcast %cst_27 : f32 to vector<1x8x32xf32>
    %44 = arith.mulf %42, %43 : vector<1x8x32xf32>
    %45 = vector.shape_cast %44 : vector<1x8x32xf32> to vector<8x32xf32>
    %46 = vector.shape_cast %16 : vector<1x8x32xf32> to vector<8x32xf32>
    %cst_28 = arith.constant dense<0.000000e+00> : vector<8x96xf32>
    %47 = tpu.matmul %45, %11, %cst_28 {dimension_numbers = #tpu.dot_dimension_numbers<[1], [0], [0], [1], [0, 0, 1, 1], [], []>} : vector<8x32xf32>, vector<32x96xf32>, vector<8x96xf32> -> vector<8x96xf32>
    %48 = vector.broadcast %13 : vector<1x96xf32> to vector<8x96xf32>
    %49 = arith.addf %47, %48 : vector<8x96xf32>
    %cst_29 = arith.constant dense<0.000000e+00> : vector<8x96xf32>
    %50 = tpu.matmul %46, %12, %cst_29 {dimension_numbers = #tpu.dot_dimension_numbers<[1], [0], [0], [1], [0, 0, 1, 1], [], []>} : vector<8x32xf32>, vector<32x96xf32>, vector<8x96xf32> -> vector<8x96xf32>
    %51 = vector.broadcast %14 : vector<1x96xf32> to vector<8x96xf32>
    %52 = arith.addf %50, %51 : vector<8x96xf32>
    %53 = vector.extract_strided_slice %49 {offsets = [0, 0], sizes = [8, 64], strides = [1, 1]} : vector<8x96xf32> to vector<8x64xf32>
    %54 = vector.extract_strided_slice %52 {offsets = [0, 0], sizes = [8, 64], strides = [1, 1]} : vector<8x96xf32> to vector<8x64xf32>
    %55 = arith.addf %53, %54 : vector<8x64xf32>
    %56 = arith.negf %55 : vector<8x64xf32>
    %57 = math.exp %56 : vector<8x64xf32>
    %cst_30 = arith.constant 1.000000e+00 : f32
    %58 = vector.broadcast %cst_30 : f32 to vector<8x64xf32>
    %59 = arith.addf %58, %57 : vector<8x64xf32>
    %60 = arith.divf %58, %59 : vector<8x64xf32>
    %61 = vector.extract_strided_slice %60 {offsets = [0, 0], sizes = [8, 32], strides = [1, 1]} : vector<8x64xf32> to vector<8x32xf32>
    %62 = vector.extract_strided_slice %60 {offsets = [0, 32], sizes = [8, 32], strides = [1, 1]} : vector<8x64xf32> to vector<8x32xf32>
    %63 = vector.extract_strided_slice %49 {offsets = [0, 64], sizes = [8, 32], strides = [1, 1]} : vector<8x96xf32> to vector<8x32xf32>
    %64 = vector.extract_strided_slice %52 {offsets = [0, 64], sizes = [8, 32], strides = [1, 1]} : vector<8x96xf32> to vector<8x32xf32>
    %65 = arith.mulf %61, %64 : vector<8x32xf32>
    %66 = arith.addf %63, %65 : vector<8x32xf32>
    %67 = math.tanh %66 : vector<8x32xf32>
    %cst_31 = arith.constant 1.000000e+00 : f32
    %68 = vector.broadcast %cst_31 : f32 to vector<8x32xf32>
    %69 = arith.subf %68, %62 : vector<8x32xf32>
    %70 = arith.mulf %69, %67 : vector<8x32xf32>
    %71 = arith.mulf %62, %46 : vector<8x32xf32>
    %72 = arith.addf %70, %71 : vector<8x32xf32>
    %73 = vector.shape_cast %72 : vector<8x32xf32> to vector<1x8x32xf32>
    %cst_32 = arith.constant dense<0.000000e+00> : vector<1x8x128xf32>
    %74 = tpu.matmul %73, %9, %cst_32 {dimension_numbers = #tpu.dot_dimension_numbers<[2], [2], [1], [1], [0, 0, 0, 1, 1, 1], [0], [0]>} : vector<1x8x32xf32>, vector<1x128x32xf32>, vector<1x8x128xf32> -> vector<1x8x128xf32>
    %cst_33 = arith.constant dense<0.000000e+00> : vector<1x8xf32>
    %75 = vector.multi_reduction <add>, %74, %cst_33 [2] : vector<1x8x128xf32> to vector<1x8xf32>
    %76 = vector.shape_cast %75 : vector<1x8xf32> to vector<1x8x1xf32>
    %cst_34 = arith.constant dense<0.000000e+00> : vector<1x1xf32>
    %77 = vector.multi_reduction <add>, %76, %cst_34 [1] : vector<1x8x1xf32> to vector<1x1xf32>
    %78 = vector.shape_cast %77 : vector<1x1xf32> to vector<1x1x1xf32>
    %79 = vector.broadcast %78 : vector<1x1x1xf32> to vector<1x8x1xf32>
    %80 = arith.divf %79, %76 : vector<1x8x1xf32>
    %81 = vector.broadcast %80 : vector<1x8x1xf32> to vector<1x8x128xf32>
    %82 = arith.mulf %74, %81 : vector<1x8x128xf32>
    %cst_35 = arith.constant dense<0xFF800000> : vector<1x128xf32>
    %83 = vector.multi_reduction <maximumf>, %82, %cst_35 [1] : vector<1x8x128xf32> to vector<1x128xf32>
    %84 = vector.shape_cast %83 : vector<1x128xf32> to vector<1x1x128xf32>
    %85 = vector.broadcast %84 : vector<1x1x128xf32> to vector<1x8x128xf32>
    %86 = arith.subf %82, %85 : vector<1x8x128xf32>
    %87 = math.exp %86 : vector<1x8x128xf32>
    %cst_36 = arith.constant dense<0.000000e+00> : vector<1x128xf32>
    %88 = vector.multi_reduction <add>, %87, %cst_36 [1] : vector<1x8x128xf32> to vector<1x128xf32>
    %89 = vector.shape_cast %88 : vector<1x128xf32> to vector<1x1x128xf32>
    %90 = tpu.reciprocal %89 : vector<1x1x128xf32> -> vector<1x1x128xf32>
    %91 = vector.broadcast %90 : vector<1x1x128xf32> to vector<1x8x128xf32>
    %92 = arith.mulf %87, %91 : vector<1x8x128xf32>
    %93 = arith.negf %82 : vector<1x8x128xf32>
    %94 = math.exp %93 : vector<1x8x128xf32>
    %cst_37 = arith.constant 1.000000e+00 : f32
    %95 = vector.broadcast %cst_37 : f32 to vector<1x8x128xf32>
    %96 = arith.addf %95, %94 : vector<1x8x128xf32>
    %97 = arith.divf %95, %96 : vector<1x8x128xf32>
    %98 = arith.mulf %92, %97 : vector<1x8x128xf32>
    %cst_38 = arith.constant dense<0.000000e+00> : vector<1x8x32xf32>
    %99 = tpu.matmul %98, %10, %cst_38 {dimension_numbers = #tpu.dot_dimension_numbers<[2], [1], [1], [2], [0, 0, 0, 1, 1, 2], [0], [0]>} : vector<1x8x128xf32>, vector<1x128x32xf32>, vector<1x8x32xf32> -> vector<1x8x32xf32>
    %cst_39 = arith.constant 3.125000e-02 : f32
    %100 = vector.broadcast %cst_39 : f32 to vector<1x8x32xf32>
    %101 = arith.mulf %99, %100 : vector<1x8x32xf32>
    %102 = vector.shape_cast %101 : vector<1x8x32xf32> to vector<8x32xf32>
    %103 = vector.shape_cast %73 : vector<1x8x32xf32> to vector<8x32xf32>
    %cst_40 = arith.constant dense<0.000000e+00> : vector<8x96xf32>
    %104 = tpu.matmul %102, %11, %cst_40 {dimension_numbers = #tpu.dot_dimension_numbers<[1], [0], [0], [1], [0, 0, 1, 1], [], []>} : vector<8x32xf32>, vector<32x96xf32>, vector<8x96xf32> -> vector<8x96xf32>
    %105 = vector.broadcast %13 : vector<1x96xf32> to vector<8x96xf32>
    %106 = arith.addf %104, %105 : vector<8x96xf32>
    %cst_41 = arith.constant dense<0.000000e+00> : vector<8x96xf32>
    %107 = tpu.matmul %103, %12, %cst_41 {dimension_numbers = #tpu.dot_dimension_numbers<[1], [0], [0], [1], [0, 0, 1, 1], [], []>} : vector<8x32xf32>, vector<32x96xf32>, vector<8x96xf32> -> vector<8x96xf32>
    %108 = vector.broadcast %14 : vector<1x96xf32> to vector<8x96xf32>
    %109 = arith.addf %107, %108 : vector<8x96xf32>
    %110 = vector.extract_strided_slice %106 {offsets = [0, 0], sizes = [8, 64], strides = [1, 1]} : vector<8x96xf32> to vector<8x64xf32>
    %111 = vector.extract_strided_slice %109 {offsets = [0, 0], sizes = [8, 64], strides = [1, 1]} : vector<8x96xf32> to vector<8x64xf32>
    %112 = arith.addf %110, %111 : vector<8x64xf32>
    %113 = arith.negf %112 : vector<8x64xf32>
    %114 = math.exp %113 : vector<8x64xf32>
    %cst_42 = arith.constant 1.000000e+00 : f32
    %115 = vector.broadcast %cst_42 : f32 to vector<8x64xf32>
    %116 = arith.addf %115, %114 : vector<8x64xf32>
    %117 = arith.divf %115, %116 : vector<8x64xf32>
    %118 = vector.extract_strided_slice %117 {offsets = [0, 0], sizes = [8, 32], strides = [1, 1]} : vector<8x64xf32> to vector<8x32xf32>
    %119 = vector.extract_strided_slice %117 {offsets = [0, 32], sizes = [8, 32], strides = [1, 1]} : vector<8x64xf32> to vector<8x32xf32>
    %120 = vector.extract_strided_slice %106 {offsets = [0, 64], sizes = [8, 32], strides = [1, 1]} : vector<8x96xf32> to vector<8x32xf32>
    %121 = vector.extract_strided_slice %109 {offsets = [0, 64], sizes = [8, 32], strides = [1, 1]} : vector<8x96xf32> to vector<8x32xf32>
    %122 = arith.mulf %118, %121 : vector<8x32xf32>
    %123 = arith.addf %120, %122 : vector<8x32xf32>
    %124 = math.tanh %123 : vector<8x32xf32>
    %cst_43 = arith.constant 1.000000e+00 : f32
    %125 = vector.broadcast %cst_43 : f32 to vector<8x32xf32>
    %126 = arith.subf %125, %119 : vector<8x32xf32>
    %127 = arith.mulf %126, %124 : vector<8x32xf32>
    %128 = arith.mulf %119, %103 : vector<8x32xf32>
    %129 = arith.addf %127, %128 : vector<8x32xf32>
    %130 = vector.shape_cast %129 : vector<8x32xf32> to vector<1x8x32xf32>
    %cst_44 = arith.constant dense<0.000000e+00> : vector<1x8x128xf32>
    %131 = tpu.matmul %130, %9, %cst_44 {dimension_numbers = #tpu.dot_dimension_numbers<[2], [2], [1], [1], [0, 0, 0, 1, 1, 1], [0], [0]>} : vector<1x8x32xf32>, vector<1x128x32xf32>, vector<1x8x128xf32> -> vector<1x8x128xf32>
    %cst_45 = arith.constant dense<0.000000e+00> : vector<1x8xf32>
    %132 = vector.multi_reduction <add>, %131, %cst_45 [2] : vector<1x8x128xf32> to vector<1x8xf32>
    %133 = vector.shape_cast %132 : vector<1x8xf32> to vector<1x8x1xf32>
    %cst_46 = arith.constant dense<0.000000e+00> : vector<1x1xf32>
    %134 = vector.multi_reduction <add>, %133, %cst_46 [1] : vector<1x8x1xf32> to vector<1x1xf32>
    %135 = vector.shape_cast %134 : vector<1x1xf32> to vector<1x1x1xf32>
    %136 = vector.broadcast %135 : vector<1x1x1xf32> to vector<1x8x1xf32>
    %137 = arith.divf %136, %133 : vector<1x8x1xf32>
    %138 = vector.broadcast %137 : vector<1x8x1xf32> to vector<1x8x128xf32>
    %139 = arith.mulf %131, %138 : vector<1x8x128xf32>
    %cst_47 = arith.constant dense<0xFF800000> : vector<1x128xf32>
    %140 = vector.multi_reduction <maximumf>, %139, %cst_47 [1] : vector<1x8x128xf32> to vector<1x128xf32>
    %141 = vector.shape_cast %140 : vector<1x128xf32> to vector<1x1x128xf32>
    %142 = vector.broadcast %141 : vector<1x1x128xf32> to vector<1x8x128xf32>
    %143 = arith.subf %139, %142 : vector<1x8x128xf32>
    %144 = math.exp %143 : vector<1x8x128xf32>
    %cst_48 = arith.constant dense<0.000000e+00> : vector<1x128xf32>
    %145 = vector.multi_reduction <add>, %144, %cst_48 [1] : vector<1x8x128xf32> to vector<1x128xf32>
    %146 = vector.shape_cast %145 : vector<1x128xf32> to vector<1x1x128xf32>
    %147 = tpu.reciprocal %146 : vector<1x1x128xf32> -> vector<1x1x128xf32>
    %148 = vector.broadcast %147 : vector<1x1x128xf32> to vector<1x8x128xf32>
    %149 = arith.mulf %144, %148 : vector<1x8x128xf32>
    %150 = arith.negf %139 : vector<1x8x128xf32>
    %151 = math.exp %150 : vector<1x8x128xf32>
    %cst_49 = arith.constant 1.000000e+00 : f32
    %152 = vector.broadcast %cst_49 : f32 to vector<1x8x128xf32>
    %153 = arith.addf %152, %151 : vector<1x8x128xf32>
    %154 = arith.divf %152, %153 : vector<1x8x128xf32>
    %155 = arith.mulf %149, %154 : vector<1x8x128xf32>
    %cst_50 = arith.constant dense<0.000000e+00> : vector<1x8x32xf32>
    %156 = tpu.matmul %155, %10, %cst_50 {dimension_numbers = #tpu.dot_dimension_numbers<[2], [1], [1], [2], [0, 0, 0, 1, 1, 2], [0], [0]>} : vector<1x8x128xf32>, vector<1x128x32xf32>, vector<1x8x32xf32> -> vector<1x8x32xf32>
    %cst_51 = arith.constant 3.125000e-02 : f32
    %157 = vector.broadcast %cst_51 : f32 to vector<1x8x32xf32>
    %158 = arith.mulf %156, %157 : vector<1x8x32xf32>
    %cst_52 = arith.constant dense<0.000000e+00> : vector<1x8xf32>
    %159 = vector.multi_reduction <add>, %158, %cst_52 [2] : vector<1x8x32xf32> to vector<1x8xf32>
    %cst_53 = arith.constant 1.000000e+00 : f32
    %160 = vector.broadcast %cst_53 : f32 to vector<1x8xf32>
    %161 = arith.mulf %160, %159 : vector<1x8xf32>
    %162 = vector.shape_cast %161 : vector<1x8xf32> to vector<1x1x8xf32>
    %c0_54 = arith.constant 0 : index
    %c0_55 = arith.constant 0 : index
    %c0_56 = arith.constant 0 : index
    %163 = vector.load %arg10[%c0_54, %c0_55, %c0_56] : memref<1x1x8xf32, #tpu.memory_space<vmem>>, vector<1x1x8xf32>
    tpu.vector_store %arg10[%c0_54, %c0_55, %c0_56], %162 {strides = array<i32>} : memref<1x1x8xf32, #tpu.memory_space<vmem>>, vector<1x1x8xf32>,
    %cst_57 = arith.constant dense<0.000000e+00> : vector<1xf32>
    %164 = vector.multi_reduction <add>, %155, %cst_57 [1, 2] : vector<1x8x128xf32> to vector<1xf32>
    %165 = vector.shape_cast %164 : vector<1xf32> to vector<1x1x1xf32>
    %c0_58 = arith.constant 0 : index
    %c0_59 = arith.constant 0 : index
    %c0_60 = arith.constant 0 : index
    %166 = vector.load %arg11[%c0_58, %c0_59, %c0_60] : memref<1x1x1xf32, #tpu.memory_space<vmem>>, vector<1x1x1xf32>
    tpu.vector_store %arg11[%c0_58, %c0_59, %c0_60], %165 {strides = array<i32>} : memref<1x1x1xf32, #tpu.memory_space<vmem>>, vector<1x1x1xf32>,
    return
  }
  func.func @transform_0(%arg0: i32) -> (i32, i32, i32) {
    %c0_i32 = arith.constant 0 : i32
    %c0_i32_0 = arith.constant 0 : i32
    %c0_i32_1 = arith.constant 0 : i32
    return %arg0, %c0_i32, %c0_i32_0 : i32, i32, i32
  }
  func.func @transform_1(%arg0: i32) -> (i32, i32, i32) {
    %c0_i32 = arith.constant 0 : i32
    %c0_i32_0 = arith.constant 0 : i32
    %c0_i32_1 = arith.constant 0 : i32
    return %arg0, %c0_i32, %c0_i32_0 : i32, i32, i32
  }
  func.func @transform_2(%arg0: i32) -> (i32, i32) {
    %c0_i32 = arith.constant 0 : i32
    %c0_i32_0 = arith.constant 0 : i32
    %c0_i32_1 = arith.constant 0 : i32
    return %c0_i32, %c0_i32_0 : i32, i32
  }
  func.func @transform_3(%arg0: i32) -> (i32, i32) {
    %c0_i32 = arith.constant 0 : i32
    %c0_i32_0 = arith.constant 0 : i32
    %c0_i32_1 = arith.constant 0 : i32
    return %c0_i32, %c0_i32_0 : i32, i32
  }
  func.func @transform_4(%arg0: i32) -> (i32, i32) {
    %c0_i32 = arith.constant 0 : i32
    %c0_i32_0 = arith.constant 0 : i32
    %c0_i32_1 = arith.constant 0 : i32
    return %c0_i32, %c0_i32_0 : i32, i32
  }
  func.func @transform_5(%arg0: i32) -> (i32, i32) {
    %c0_i32 = arith.constant 0 : i32
    %c0_i32_0 = arith.constant 0 : i32
    %c0_i32_1 = arith.constant 0 : i32
    return %c0_i32, %c0_i32_0 : i32, i32
  }
  func.func @transform_6(%arg0: i32) -> (i32, i32) {
    %c0_i32 = arith.constant 0 : i32
    %c0_i32_0 = arith.constant 0 : i32
    %c0_i32_1 = arith.constant 0 : i32
    return %c0_i32, %c0_i32_0 : i32, i32
  }
  func.func @transform_7(%arg0: i32) -> (i32, i32) {
    %c0_i32 = arith.constant 0 : i32
    %c0_i32_0 = arith.constant 0 : i32
    %c0_i32_1 = arith.constant 0 : i32
    return %c0_i32, %c0_i32_0 : i32, i32
  }
  func.func @transform_8(%arg0: i32) -> (i32, i32) {
    %c0_i32 = arith.constant 0 : i32
    %c0_i32_0 = arith.constant 0 : i32
    %c0_i32_1 = arith.constant 0 : i32
    return %c0_i32, %c0_i32_0 : i32, i32
  }
  func.func @transform_9(%arg0: i32) -> (i32, i32, i32) {
    %c0_i32 = arith.constant 0 : i32
    %c0_i32_0 = arith.constant 0 : i32
    %c0_i32_1 = arith.constant 0 : i32
    return %arg0, %c0_i32, %c0_i32_0 : i32, i32, i32
  }
  func.func @transform_10(%arg0: i32) -> (i32, i32, i32) {
    %c0_i32 = arith.constant 0 : i32
    %c0_i32_0 = arith.constant 0 : i32
    %c0_i32_1 = arith.constant 0 : i32
    return %arg0, %c0_i32, %c0_i32_0 : i32, i32, i32
  }
}

</mosaic_0001>

<llo_original>
// kernel: tpu_custom_call.1
$region0: #{tpu_custom_call.1}
  #allocation0 [shape = 'u32[]', space=smem, size = 0x4, offset = 0x4, fixed_abs, tag = 'smem constant byte address 0x4 - core index']
  #allocation1 [shape = 'u32[144,128]{1,0:T(1,128)}', space=vmem, size = 0x12000, scoped, tag = 'internal scratch']
  %s0 = inlined_call_operand.vmem [shape: f32[2,128,32], index: 0, kind: input, shape index: {}]
  %s1 = inlined_call_operand.vmem [shape: f32[2,128,32], index: 1, kind: input, shape index: {}]
  %s2 = inlined_call_operand.vmem [shape: f32[8,32], index: 2, kind: input, shape index: {}]
  %s3 = inlined_call_operand.vmem [shape: f32[32,32], index: 3, kind: input, shape index: {}]
  %s4 = inlined_call_operand.vmem [shape: f32[1,32], index: 4, kind: input, shape index: {}]
  %s5 = inlined_call_operand.vmem [shape: f32[32,96], index: 5, kind: input, shape index: {}]
  %s6 = inlined_call_operand.vmem [shape: f32[32,96], index: 6, kind: input, shape index: {}]
  %s7 = inlined_call_operand.vmem [shape: f32[1,96], index: 7, kind: input, shape index: {}]
  %s8 = inlined_call_operand.vmem [shape: f32[1,96], index: 8, kind: input, shape index: {}]
  %s9 = inlined_call_operand.hbm [shape: f32[2,1,8], index: 9, kind: output, shape index: {0}]
  %s10 = inlined_call_operand.vmem [shape: f32[2,1,1], index: 10, kind: output, shape index: {1}]
  %11 = xla_tuple %s9, %s10
  %s12 = sld [smem:[#allocation0]]
  $region77: #{tpu_custom_call.1} parent=0
    _
  %s14 = ssub.s32 1, %s12
  %s15 = scalar_select 0, %s14, %s12
  $region1: #{tpu_custom_call.1} parent=0
    #allocation2 [shape = 'u8[1024]{0}', space=vmem, size = 0x400, scoped, tag = 'output window, operand 0']
    #allocation3 [shape = 's32[2]{0}', space=sflag, size = 0x8, scoped, tag = 'scoped memory for tpu_custom_call.1']
    %16 = vsyncpa [#allocation3], 0
    %s17 = scalar_lea.sflag [#allocation3], 1
    %18 = vsyncpa %s17, 0
    loop: start=0, step=1, limit=4
    $region2: #{tpu_custom_call.1} parent=1 // loop_pre_header
      _
    $region3: #{tpu_custom_call.1} parent=1 // loop_header
      %s20 = sphi 0, %s24
      %p21 = scmp.ge.s32.totalorder %s20, 4
      %s30 = sphi 0, %s32
      %s33 = sphi 0, %s30
      %s34 = sphi 0, %s33
      %s50 = sphi 0, %s34
      %s56 = sphi 0, %s58
      %s59 = sphi 0, %s56
      %s60 = sphi 0, %s59
      %s76 = sphi 0, %s60
      %s80 = sphi 0, %s80
      %s82 = sphi 0, %s80
      %s83 = sphi 0, %s82
      %s97 = sphi 0, %s83
      %s101 = sphi 0, %s101
      %s103 = sphi 0, %s101
      %s104 = sphi 0, %s103
      %s118 = sphi 0, %s104
      %s122 = sphi 0, %s122
      %s124 = sphi 0, %s122
      %s125 = sphi 0, %s124
      %s139 = sphi 0, %s125
      %s143 = sphi 0, %s143
      %s145 = sphi 0, %s143
      %s146 = sphi 0, %s145
      %s160 = sphi 0, %s146
      %s164 = sphi 0, %s164
      %s166 = sphi 0, %s164
      %s167 = sphi 0, %s166
      %s181 = sphi 0, %s167
      %s185 = sphi 0, %s185
      %s187 = sphi 0, %s185
      %s188 = sphi 0, %s187
      %s202 = sphi 0, %s188
      %s206 = sphi 0, %s206
      %s208 = sphi 0, %s206
      %s209 = sphi 0, %s208
      %s223 = sphi 0, %s209
      %s229 = sphi 0, %s231
      %s232 = sphi 0, %s229
      %s233 = sphi 0, %s232
      %s249 = sphi 0, %s233
      %s255 = sphi 0, %s257
      %s258 = sphi 0, %s255
      %s259 = sphi 0, %s258
      %s275 = sphi 0, %s259
    $region4: #{tpu_custom_call.1} parent=1 // loop_header_branch
      %23 = sbr.rel (%p21) target = $region8
    $region5: #{tpu_custom_call.1} parent=1 // loop_body
      %s25 = ssub.s32 %s20, 1
      %s26 = ssub.s32 %s20, 2
      %s27 = sadd.s32 %s20, 1
      %s28 = ssub.s32 %s20, %s27
      %p29 = scmp.eq.s32.totalorder %s28, 0
      %s31 = sadd.s32 %s30, 1
      %s32 = scalar_select %p29, %s30, %s31
      %p35 = pneg %p29
      %p36 = scmp.eq.s32.totalorder %s20, 1
      %p37 = por %p35, %p36
      %p38 = scmp.ne.s32.totalorder %s30, %s33
      %p39 = scmp.eq.s32.totalorder %s20, 0
      %p40 = por %p38, %p39
      %p41 = scmp.ne.s32.totalorder %s30, %s33
      %p42 = scmp.eq.s32.totalorder %s25, 1
      %p43 = por %p41, %p42
      %p44 = scmp.ne.s32.totalorder %s33, %s34
      %p45 = scmp.eq.s32.totalorder %s25, 0
      %p46 = por %p44, %p45
      %p47 = scmp.ne.s32.totalorder %s33, %s34
      %p48 = scmp.eq.s32.totalorder %s26, 1
      %p49 = por %p47, %p48
      %p51 = scmp.ne.s32.totalorder %s34, %s50
      %p52 = scmp.eq.s32.totalorder %s26, 0
      %p53 = por %p51, %p52
      %s54 = ssub.s32 %s20, %s27
      %p55 = scmp.eq.s32.totalorder %s54, 0
      %s57 = sadd.s32 %s56, 1
      %s58 = scalar_select %p55, %s56, %s57
      %p61 = pneg %p55
      %p62 = scmp.eq.s32.totalorder %s20, 1
      %p63 = por %p61, %p62
      %p64 = scmp.ne.s32.totalorder %s56, %s59
      %p65 = scmp.eq.s32.totalorder %s20, 0
      %p66 = por %p64, %p65
      %p67 = scmp.ne.s32.totalorder %s56, %s59
      %p68 = scmp.eq.s32.totalorder %s25, 1
      %p69 = por %p67, %p68
      %p70 = scmp.ne.s32.totalorder %s59, %s60
      %p71 = scmp.eq.s32.totalorder %s25, 0
      %p72 = por %p70, %p71
      %p73 = scmp.ne.s32.totalorder %s59, %s60
      %p74 = scmp.eq.s32.totalorder %s26, 1
      %p75 = por %p73, %p74
      %p77 = scmp.ne.s32.totalorder %s60, %s76
      %p78 = scmp.eq.s32.totalorder %s26, 0
      %p79 = por %p77, %p78
      %s81 = sadd.s32 %s80, 1
      %p84 = scmp.eq.s32.totalorder %s20, 1
      %p85 = scmp.ne.s32.totalorder %s80, %s82
      %p86 = scmp.eq.s32.totalorder %s20, 0
      %p87 = por %p85, %p86
      %p88 = scmp.ne.s32.totalorder %s80, %s82
      %p89 = scmp.eq.s32.totalorder %s25, 1
      %p90 = por %p88, %p89
      %p91 = scmp.ne.s32.totalorder %s82, %s83
      %p92 = scmp.eq.s32.totalorder %s25, 0
      %p93 = por %p91, %p92
      %p94 = scmp.ne.s32.totalorder %s82, %s83
      %p95 = scmp.eq.s32.totalorder %s26, 1
      %p96 = por %p94, %p95
      %p98 = scmp.ne.s32.totalorder %s83, %s97
      %p99 = scmp.eq.s32.totalorder %s26, 0
      %p100 = por %p98, %p99
      %s102 = sadd.s32 %s101, 1
      %p105 = scmp.eq.s32.totalorder %s20, 1
      %p106 = scmp.ne.s32.totalorder %s101, %s103
      %p107 = scmp.eq.s32.totalorder %s20, 0
      %p108 = por %p106, %p107
      %p109 = scmp.ne.s32.totalorder %s101, %s103
      %p110 = scmp.eq.s32.totalorder %s25, 1
      %p111 = por %p109, %p110
      %p112 = scmp.ne.s32.totalorder %s103, %s104
      %p113 = scmp.eq.s32.totalorder %s25, 0
      %p114 = por %p112, %p113
      %p115 = scmp.ne.s32.totalorder %s103, %s104
      %p116 = scmp.eq.s32.totalorder %s26, 1
      %p117 = por %p115, %p116
      %p119 = scmp.ne.s32.totalorder %s104, %s118
      %p120 = scmp.eq.s32.totalorder %s26, 0
      %p121 = por %p119, %p120
      %s123 = sadd.s32 %s122, 1
      %p126 = scmp.eq.s32.totalorder %s20, 1
      %p127 = scmp.ne.s32.totalorder %s122, %s124
      %p128 = scmp.eq.s32.totalorder %s20, 0
      %p129 = por %p127, %p128
      %p130 = scmp.ne.s32.totalorder %s122, %s124
      %p131 = scmp.eq.s32.totalorder %s25, 1
      %p132 = por %p130, %p131
      %p133 = scmp.ne.s32.totalorder %s124, %s125
      %p134 = scmp.eq.s32.totalorder %s25, 0
      %p135 = por %p133, %p134
      %p136 = scmp.ne.s32.totalorder %s124, %s125
      %p137 = scmp.eq.s32.totalorder %s26, 1
      %p138 = por %p136, %p137
      %p140 = scmp.ne.s32.totalorder %s125, %s139
      %p141 = scmp.eq.s32.totalorder %s26, 0
      %p142 = por %p140, %p141
      %s144 = sadd.s32 %s143, 1
      %p147 = scmp.eq.s32.totalorder %s20, 1
      %p148 = scmp.ne.s32.totalorder %s143, %s145
      %p149 = scmp.eq.s32.totalorder %s20, 0
      %p150 = por %p148, %p149
      %p151 = scmp.ne.s32.totalorder %s143, %s145
      %p152 = scmp.eq.s32.totalorder %s25, 1
      %p153 = por %p151, %p152
      %p154 = scmp.ne.s32.totalorder %s145, %s146
      %p155 = scmp.eq.s32.totalorder %s25, 0
      %p156 = por %p154, %p155
      %p157 = scmp.ne.s32.totalorder %s145, %s146
      %p158 = scmp.eq.s32.totalorder %s26, 1
      %p159 = por %p157, %p158
      %p161 = scmp.ne.s32.totalorder %s146, %s160
      %p162 = scmp.eq.s32.totalorder %s26, 0
      %p163 = por %p161, %p162
      %s165 = sadd.s32 %s164, 1
      %p168 = scmp.eq.s32.totalorder %s20, 1
      %p169 = scmp.ne.s32.totalorder %s164, %s166
      %p170 = scmp.eq.s32.totalorder %s20, 0
      %p171 = por %p169, %p170
      %p172 = scmp.ne.s32.totalorder %s164, %s166
      %p173 = scmp.eq.s32.totalorder %s25, 1
      %p174 = por %p172, %p173
      %p175 = scmp.ne.s32.totalorder %s166, %s167
      %p176 = scmp.eq.s32.totalorder %s25, 0
      %p177 = por %p175, %p176
      %p178 = scmp.ne.s32.totalorder %s166, %s167
      %p179 = scmp.eq.s32.totalorder %s26, 1
      %p180 = por %p178, %p179
      %p182 = scmp.ne.s32.totalorder %s167, %s181
      %p183 = scmp.eq.s32.totalorder %s26, 0
      %p184 = por %p182, %p183
      %s186 = sadd.s32 %s185, 1
      %p189 = scmp.eq.s32.totalorder %s20, 1
      %p190 = scmp.ne.s32.totalorder %s185, %s187
      %p191 = scmp.eq.s32.totalorder %s20, 0
      %p192 = por %p190, %p191
      %p193 = scmp.ne.s32.totalorder %s185, %s187
      %p194 = scmp.eq.s32.totalorder %s25, 1
      %p195 = por %p193, %p194
      %p196 = scmp.ne.s32.totalorder %s187, %s188
      %p197 = scmp.eq.s32.totalorder %s25, 0
      %p198 = por %p196, %p197
      %p199 = scmp.ne.s32.totalorder %s187, %s188
      %p200 = scmp.eq.s32.totalorder %s26, 1
      %p201 = por %p199, %p200
      %p203 = scmp.ne.s32.totalorder %s188, %s202
      %p204 = scmp.eq.s32.totalorder %s26, 0
      %p205 = por %p203, %p204
      %s207 = sadd.s32 %s206, 1
      %p210 = scmp.eq.s32.totalorder %s20, 1
      %p211 = scmp.ne.s32.totalorder %s206, %s208
      %p212 = scmp.eq.s32.totalorder %s20, 0
      %p213 = por %p211, %p212
      %p214 = scmp.ne.s32.totalorder %s206, %s208
      %p215 = scmp.eq.s32.totalorder %s25, 1
      %p216 = por %p214, %p215
      %p217 = scmp.ne.s32.totalorder %s208, %s209
      %p218 = scmp.eq.s32.totalorder %s25, 0
      %p219 = por %p217, %p218
      %p220 = scmp.ne.s32.totalorder %s208, %s209
      %p221 = scmp.eq.s32.totalorder %s26, 1
      %p222 = por %p220, %p221
      %p224 = scmp.ne.s32.totalorder %s209, %s223
      %p225 = scmp.eq.s32.totalorder %s26, 0
      %p226 = por %p224, %p225
      %s227 = ssub.s32 %s20, %s27
      %p228 = scmp.eq.s32.totalorder %s227, 0
      %s230 = sadd.s32 %s229, 1
      %s231 = scalar_select %p228, %s229, %s230
      %p234 = pneg %p228
      %p235 = scmp.eq.s32.totalorder %s20, 1
      %p236 = por %p234, %p235
      %p237 = scmp.ne.s32.totalorder %s229, %s232
      %p238 = scmp.eq.s32.totalorder %s20, 0
      %p239 = por %p237, %p238
      %p240 = scmp.ne.s32.totalorder %s229, %s232
      %p241 = scmp.eq.s32.totalorder %s25, 1
      %p242 = por %p240, %p241
      %p243 = scmp.ne.s32.totalorder %s232, %s233
      %p244 = scmp.eq.s32.totalorder %s25, 0
      %p245 = por %p243, %p244
      %p246 = scmp.ne.s32.totalorder %s232, %s233
      %p247 = scmp.eq.s32.totalorder %s26, 1
      %p248 = por %p246, %p247
      %p250 = scmp.ne.s32.totalorder %s233, %s249
      %p251 = scmp.eq.s32.totalorder %s26, 0
      %p252 = por %p250, %p251
      %s253 = ssub.s32 %s20, %s27
      %p254 = scmp.eq.s32.totalorder %s253, 0
      %s256 = sadd.s32 %s255, 1
      %s257 = scalar_select %p254, %s255, %s256
      %p260 = pneg %p254
      %p261 = scmp.eq.s32.totalorder %s20, 1
      %p262 = por %p260, %p261
      %p263 = scmp.ne.s32.totalorder %s255, %s258
      %p264 = scmp.eq.s32.totalorder %s20, 0
      %p265 = por %p263, %p264
      %p266 = scmp.ne.s32.totalorder %s255, %s258
      %p267 = scmp.eq.s32.totalorder %s25, 1
      %p268 = por %p266, %p267
      %p269 = scmp.ne.s32.totalorder %s258, %s259
      %p270 = scmp.eq.s32.totalorder %s25, 0
      %p271 = por %p269, %p270
      %p272 = scmp.ne.s32.totalorder %s258, %s259
      %p273 = scmp.eq.s32.totalorder %s26, 1
      %p274 = por %p272, %p273
      %p276 = scmp.ne.s32.totalorder %s259, %s275
      %p277 = scmp.eq.s32.totalorder %s26, 0
      %p278 = por %p276, %p277
      %p279 = scmp.le.s32.totalorder 1, %s20
      %p280 = scmp.lt.s32.totalorder %s20, 3
      %p281 = pnand %p279, %p280
      %p282 = pneg %p281
      // Predicated region
      $region9: #{tpu_custom_call.1} parent=5 // pred_check
        _
      $region10: #{tpu_custom_call.1} parent=5 // pred_check_branch
        %284 = sbr.rel (%p281) target = $region12
      $region11: #{tpu_custom_call.1} parent=5 // pred_region
        %s285 = ssub.s32 %s20, 1
        // Predicated region
        $region13: #{tpu_custom_call.1} parent=11 // pred_check
          %p286 = pneg %p93
        $region14: #{tpu_custom_call.1} parent=11 // pred_check_branch
          %288 = sbr.rel (%p286) target = $region16
        $region15: #{tpu_custom_call.1} parent=11 // pred_region
          _
        $region16: #{tpu_custom_call.1} parent=11 // pred_fallthru
          _
        // Predicated region
        $region17: #{tpu_custom_call.1} parent=11 // pred_check
          %p289 = pneg %p114
        $region18: #{tpu_custom_call.1} parent=11 // pred_check_branch
          %291 = sbr.rel (%p289) target = $region20
        $region19: #{tpu_custom_call.1} parent=11 // pred_region
          _
        $region20: #{tpu_custom_call.1} parent=11 // pred_fallthru
          _
        // Predicated region
        $region21: #{tpu_custom_call.1} parent=11 // pred_check
          %p292 = pneg %p135
        $region22: #{tpu_custom_call.1} parent=11 // pred_check_branch
          %294 = sbr.rel (%p292) target = $region24
        $region23: #{tpu_custom_call.1} parent=11 // pred_region
          _
        $region24: #{tpu_custom_call.1} parent=11 // pred_fallthru
          _
        // Predicated region
        $region25: #{tpu_custom_call.1} parent=11 // pred_check
          %p295 = pneg %p156
        $region26: #{tpu_custom_call.1} parent=11 // pred_check_branch
          %297 = sbr.rel (%p295) target = $region28
        $region27: #{tpu_custom_call.1} parent=11 // pred_region
          _
        $region28: #{tpu_custom_call.1} parent=11 // pred_fallthru
          _
        // Predicated region
        $region29: #{tpu_custom_call.1} parent=11 // pred_check
          %p298 = pneg %p177
        $region30: #{tpu_custom_call.1} parent=11 // pred_check_branch
          %300 = sbr.rel (%p298) target = $region32
        $region31: #{tpu_custom_call.1} parent=11 // pred_region
          _
        $region32: #{tpu_custom_call.1} parent=11 // pred_fallthru
          _
        // Predicated region
        $region33: #{tpu_custom_call.1} parent=11 // pred_check
          %p301 = pneg %p198
        $region34: #{tpu_custom_call.1} parent=11 // pred_check_branch
          %303 = sbr.rel (%p301) target = $region36
        $region35: #{tpu_custom_call.1} parent=11 // pred_region
          _
        $region36: #{tpu_custom_call.1} parent=11 // pred_fallthru
          _
        // Predicated region
        $region37: #{tpu_custom_call.1} parent=11 // pred_check
          %p304 = pneg %p219
        $region38: #{tpu_custom_call.1} parent=11 // pred_check_branch
          %306 = sbr.rel (%p304) target = $region40
        $region39: #{tpu_custom_call.1} parent=11 // pred_region
          _
        $region40: #{tpu_custom_call.1} parent=11 // pred_fallthru
          _
      $region12: #{tpu_custom_call.1} parent=5 // pred_fallthru
        _
      %p307 = scmp.lt.s32.totalorder %s20, 2
      // Predicated region
      $region41: #{tpu_custom_call.1} parent=5 // pred_check
        %p308 = pneg %p307
      $region42: #{tpu_custom_call.1} parent=5 // pred_check_branch
        %310 = sbr.rel (%p308) target = $region44
      $region43: #{tpu_custom_call.1} parent=5 // pred_region
        // Predicated region
        $region45: #{tpu_custom_call.1} parent=43 // pred_check
          %p311 = pneg %p40
        $region46: #{tpu_custom_call.1} parent=43 // pred_check_branch
          %313 = sbr.rel (%p311) target = $region48
        $region47: #{tpu_custom_call.1} parent=43 // pred_region
          %p314 = scmp.lt.s32.totalorder %s20, 1
          %s315 = scalar_select %p314, %s20, 1
          %s316 = smul.addr %s315, 16
          %s317 = smul.addr %s316, 8
          %s318 = scalar_lea.vmem %s0, %s317
        $region48: #{tpu_custom_call.1} parent=43 // pred_fallthru
          _
        // Predicated region
        $region49: #{tpu_custom_call.1} parent=43 // pred_check
          %p319 = pneg %p66
        $region50: #{tpu_custom_call.1} parent=43 // pred_check_branch
          %321 = sbr.rel (%p319) target = $region52
        $region51: #{tpu_custom_call.1} parent=43 // pred_region
          %p322 = scmp.lt.s32.totalorder %s20, 1
          %s323 = scalar_select %p322, %s20, 1
          %s324 = smul.addr %s323, 16
          %s325 = smul.addr %s324, 8
          %s326 = scalar_lea.vmem %s1, %s325
        $region52: #{tpu_custom_call.1} parent=43 // pred_fallthru
          _
      $region44: #{tpu_custom_call.1} parent=5 // pred_fallthru
        _
      %p327 = scmp.le.s32.totalorder 1, %s20
      %p328 = scmp.lt.s32.totalorder %s20, 3
      %p329 = pnand %p327, %p328
      %p330 = pneg %p329
      // Predicated region
      $region53: #{tpu_custom_call.1} parent=5 // pred_check
        _
      $region54: #{tpu_custom_call.1} parent=5 // pred_check_branch
        %332 = sbr.rel (%p329) target = $region56
      $region55: #{tpu_custom_call.1} parent=5 // pred_region
        %s333 = ssub.s32 %s20, 1
        %p334 = scmp.lt.s32.totalorder %s25, 1
        %s335 = scalar_select %p334, %s25, 1
        %s336 = smul.addr %s335, 16
        %s337 = smul.addr %s336, 8
        %s338 = scalar_lea.vmem %s0, %s337
        %p339 = pneg %p46
        %p340 = pneg %p43
        %p341 = scmp.lt.s32.totalorder %s25, 1
        %s342 = scalar_select %p341, %s25, 1
        %s343 = smul.addr %s342, 16
        %s344 = smul.addr %s343, 8
        %s345 = scalar_lea.vmem %s1, %s344
        %p346 = pneg %p72
        %p347 = pneg %p69
        %p348 = pneg %p93
        %p349 = pneg %p90
        %p350 = pneg %p114
        %p351 = pneg %p111
        %p352 = pneg %p135
        %p353 = pneg %p132
        %p354 = pneg %p156
        %p355 = pneg %p153
        %p356 = pneg %p177
        %p357 = pneg %p174
        %p358 = pneg %p198
        %p359 = pneg %p195
        %p360 = pneg %p219
        %p361 = pneg %p216
        %p362 = pneg %p245
        %p363 = pneg %p242
        %s364 = sand.u32 %s232, 1
        %s365 = scalar_lea.sflag [#allocation3], %s364
        %s366 = sand.u32 %s232, 1
        %s367 = scalar_lea.vmem [#allocation2], %s366
        %p368 = pneg %p271
        %p369 = pneg %p268
        %p370 = scmp.lt.s32.totalorder %s25, 1
        %s371 = scalar_select %p370, %s25, 1
        %s372 = scalar_lea.vmem %s10, %s371
        %p373 = scmp.lt.s32.totalorder %s25, 1
        %s374 = scalar_select %p373, %s25, 1
        %s375 = smul.addr %s374, 16
        %s376 = smul.addr %s375, 8
        %s377 = scalar_lea.vmem %s0, %s376
        %p378 = scmp.lt.s32.totalorder %s25, 1
        %s379 = scalar_select %p378, %s25, 1
        %s380 = smul.addr %s379, 16
        %s381 = smul.addr %s380, 8
        %s382 = scalar_lea.vmem %s1, %s381
        %p383 = scmp.lt.s32.totalorder %s25, 1
        %s384 = scalar_select %p383, %s25, 1
        %s385 = scalar_lea.vmem %s10, %s384
        %v386 = vld [vmem:[%s377] sm:$0xff]
        %v387 = vld [vmem:[%s377 + $0x8] sm:$0xff]
        %v388 = vld [vmem:[%s377 + $0x10] sm:$0xff]
        %v389 = vld [vmem:[%s377 + $0x18] sm:$0xff]
        %v390 = vld [vmem:[%s377 + $0x20] sm:$0xff]
        %v391 = vld [vmem:[%s377 + $0x28] sm:$0xff]
        %v392 = vld [vmem:[%s377 + $0x30] sm:$0xff]
        %v393 = vld [vmem:[%s377 + $0x38] sm:$0xff]
        %v394 = vld [vmem:[%s377 + $0x40] sm:$0xff]
        %v395 = vld [vmem:[%s377 + $0x48] sm:$0xff]
        %v396 = vld [vmem:[%s377 + $0x50] sm:$0xff]
        %v397 = vld [vmem:[%s377 + $0x58] sm:$0xff]
        %v398 = vld [vmem:[%s377 + $0x60] sm:$0xff]
        %v399 = vld [vmem:[%s377 + $0x68] sm:$0xff]
        %v400 = vld [vmem:[%s377 + $0x70] sm:$0xff]
        %v401 = vld [vmem:[%s377 + $0x78] sm:$0xff]
        %v402 = vld [vmem:[%s3] sm:$0xff]
        %v403 = vld [vmem:[%s3 + $0x8] sm:$0xff]
        %v404 = vld [vmem:[%s3 + $0x10] sm:$0xff]
        %v405 = vld [vmem:[%s3 + $0x18] sm:$0xff]
        %v406 = vld [vmem:[%s4] sm:$0x1]
        %v408 = vlaneseq
        %v409 = vshrl.u32 %v408, 7
        %v410 = vsub.s32 0, %v409
        %v411 = vrot.slane %v406, %v410
        %vm413 = vcmask 261120
        %v415 = vsel %vm413, %v386, 0
        %v418 = vsel %vm413, %v387, 0
        %v421 = vsel %vm413, %v388, 0
        %v424 = vsel %vm413, %v389, 0
        %v427 = vsel %vm413, %v390, 0
        %v430 = vsel %vm413, %v391, 0
        %v433 = vsel %vm413, %v392, 0
        %v436 = vsel %vm413, %v393, 0
        %v439 = vsel %vm413, %v394, 0
        %v442 = vsel %vm413, %v395, 0
        %v445 = vsel %vm413, %v396, 0
        %v448 = vsel %vm413, %v397, 0
        %v451 = vsel %vm413, %v398, 0
        %v454 = vsel %vm413, %v399, 0
        %v457 = vsel %vm413, %v400, 0
        %v460 = vsel %vm413, %v401, 0
        %462 = vmatprep.subr.mxu0 0.0
        %463 = vmatpush1.msra.mxu0 0.0
        %464 = vmatprep.subr.mxu0 0.0
        %465 = vmatpush1.msra.mxu0 0.0
        %466 = vmatprep.subr.mxu0 0.0
        %467 = vmatpush1.msra.mxu0 0.0
        %468 = vmatprep.subr.mxu0 0.0
        %469 = vmatpush1.msra.mxu0 0.0
        %470 = vmatprep.subr.mxu0 0.0
        %471 = vmatpush1.msra.mxu0 0.0
        %472 = vmatprep.subr.mxu0 0.0
        %473 = vmatpush1.msra.mxu0 0.0
        %474 = vmatprep.subr.mxu0 0.0
        %475 = vmatpush1.msra.mxu0 0.0
        %476 = vmatprep.subr.mxu0 0.0
        %477 = vmatpush1.msra.mxu0 0.0
        %478 = vmatprep.subr.mxu0 0.0
        %479 = vmatpush1.msra.mxu0 0.0
        %480 = vmatprep.subr.mxu0 0.0
        %481 = vmatpush1.msra.mxu0 0.0
        %482 = vmatprep.subr.mxu0 0.0
        %483 = vmatpush1.msra.mxu0 0.0
        %484 = vmatprep.subr.mxu0 0.0
        %485 = vmatpush1.msra.mxu0 0.0
        %486 = vmatprep.subr.mxu0 0.0
        %487 = vmatpush1.msra.mxu0 %v405
        %488 = vmatprep.subr.mxu0 0.0
        %489 = vmatpush1.msra.mxu0 %v404
        %490 = vmatprep.subr.mxu0 0.0
        %491 = vmatpush1.msra.mxu0 %v403
        %492 = vmatprep.subr.mxu0 0.0
        %493 = vmatpush1.msra.mxu0 %v402
        %494 = vmatprep.subr.mxu0 0.0
        %495 = vmatpush2.msra.mxu0 0.0
        %496 = vmatprep.subr.mxu0 0.0
        %497 = vmatpush2.msra.mxu0 0.0
        %498 = vmatprep.subr.mxu0 0.0
        %499 = vmatpush2.msra.mxu0 0.0
        %500 = vmatprep.subr.mxu0 0.0
        %501 = vmatpush2.msra.mxu0 0.0
        %502 = vmatprep.subr.mxu0 0.0
        %503 = vmatpush2.msra.mxu0 0.0
        %504 = vmatprep.subr.mxu0 0.0
        %505 = vmatpush2.msra.mxu0 0.0
        %506 = vmatprep.subr.mxu0 0.0
        %507 = vmatpush2.msra.mxu0 0.0
        %508 = vmatprep.subr.mxu0 0.0
        %509 = vmatpush2.msra.mxu0 0.0
        %510 = vmatprep.subr.mxu0 0.0
        %511 = vmatpush2.msra.mxu0 0.0
        %512 = vmatprep.subr.mxu0 0.0
        %513 = vmatpush2.msra.mxu0 0.0
        %514 = vmatprep.subr.mxu0 0.0
        %515 = vmatpush2.msra.mxu0 0.0
        %516 = vmatprep.subr.mxu0 0.0
        %517 = vmatpush2.msra.mxu0 0.0
        %518 = vmatprep.subr.mxu0 0.0
        %519 = vmatpush2.msra.mxu0 0.0
        %520 = vmatprep.subr.mxu0 0.0
        %521 = vmatpush2.msra.mxu0 0.0
        %522 = vmatprep.subr.mxu0 0.0
        %523 = vmatpush2.msra.mxu0 0.0
        %524 = vmatprep.subr.mxu0 0.0
        %525 = vmatpush2.msra.mxu0 0.0
        %526 = vmatprep.mubr.f32.mxu0 0.0
        %527 = vmatmul.mubr.f32.gmra.mxu0 %v415
        %v528 = vpop.f32.mrf.mxu0
        %v529 = vadd.f32 %v411, %v528
        %v530 = vpop.f32.mrf.mxu0
        %531 = vmatprep.mubr.f32.mxu0 0.0
        %532 = vmatmul.mubr.f32.gmra.mxu0 %v418
        %v533 = vpop.f32.mrf.mxu0
        %v534 = vadd.f32 %v411, %v533
        %v535 = vpop.f32.mrf.mxu0
        %536 = vmatprep.mubr.f32.mxu0 0.0
        %537 = vmatmul.mubr.f32.gmra.mxu0 %v421
        %v538 = vpop.f32.mrf.mxu0
        %v539 = vadd.f32 %v411, %v538
        %v540 = vpop.f32.mrf.mxu0
        %541 = vmatprep.mubr.f32.mxu0 0.0
        %542 = vmatmul.mubr.f32.gmra.mxu0 %v424
        %v543 = vpop.f32.mrf.mxu0
        %v544 = vadd.f32 %v411, %v543
        %v545 = vpop.f32.mrf.mxu0
        %546 = vmatprep.mubr.f32.mxu0 0.0
        %547 = vmatmul.mubr.f32.gmra.mxu0 %v427
        %v548 = vpop.f32.mrf.mxu0
        %v549 = vadd.f32 %v411, %v548
        %v550 = vpop.f32.mrf.mxu0
        %551 = vmatprep.mubr.f32.mxu0 0.0
        %552 = vmatmul.mubr.f32.gmra.mxu0 %v430
        %v553 = vpop.f32.mrf.mxu0
        %v554 = vadd.f32 %v411, %v553
        %v555 = vpop.f32.mrf.mxu0
        %556 = vmatprep.mubr.f32.mxu0 0.0
        %557 = vmatmul.mubr.f32.gmra.mxu0 %v433
        %v558 = vpop.f32.mrf.mxu0
        %v559 = vadd.f32 %v411, %v558
        %v560 = vpop.f32.mrf.mxu0
        %561 = vmatprep.mubr.f32.mxu0 0.0
        %562 = vmatmul.mubr.f32.gmra.mxu0 %v436
        %v563 = vpop.f32.mrf.mxu0
        %v564 = vadd.f32 %v411, %v563
        %v565 = vpop.f32.mrf.mxu0
        %566 = vmatprep.mubr.f32.mxu0 0.0
        %567 = vmatmul.mubr.f32.gmra.mxu0 %v439
        %v568 = vpop.f32.mrf.mxu0
        %v569 = vadd.f32 %v411, %v568
        %v570 = vpop.f32.mrf.mxu0
        %571 = vmatprep.mubr.f32.mxu0 0.0
        %572 = vmatmul.mubr.f32.gmra.mxu0 %v442
        %v573 = vpop.f32.mrf.mxu0
        %v574 = vadd.f32 %v411, %v573
        %v575 = vpop.f32.mrf.mxu0
        %576 = vmatprep.mubr.f32.mxu0 0.0
        %577 = vmatmul.mubr.f32.gmra.mxu0 %v445
        %v578 = vpop.f32.mrf.mxu0
        %v579 = vadd.f32 %v411, %v578
        %v580 = vpop.f32.mrf.mxu0
        %581 = vmatprep.mubr.f32.mxu0 0.0
        %582 = vmatmul.mubr.f32.gmra.mxu0 %v448
        %v583 = vpop.f32.mrf.mxu0
        %v584 = vadd.f32 %v411, %v583
        %v585 = vpop.f32.mrf.mxu0
        %586 = vmatprep.mubr.f32.mxu0 0.0
        %587 = vmatmul.mubr.f32.gmra.mxu0 %v451
        %v588 = vpop.f32.mrf.mxu0
        %v589 = vadd.f32 %v411, %v588
        %v590 = vpop.f32.mrf.mxu0
        %591 = vmatprep.mubr.f32.mxu0 0.0
        %592 = vmatmul.mubr.f32.gmra.mxu0 %v454
        %v593 = vpop.f32.mrf.mxu0
        %v594 = vadd.f32 %v411, %v593
        %v595 = vpop.f32.mrf.mxu0
        %596 = vmatprep.mubr.f32.mxu0 0.0
        %597 = vmatmul.mubr.f32.gmra.mxu0 %v457
        %v598 = vpop.f32.mrf.mxu0
        %v599 = vadd.f32 %v411, %v598
        %v600 = vpop.f32.mrf.mxu0
        %601 = vmatprep.mubr.f32.mxu0 0.0
        %602 = vmatmul.mubr.f32.gmra.mxu0 %v460
        %v603 = vpop.f32.mrf.mxu0
        %v604 = vadd.f32 %v411, %v603
        %v605 = vpop.f32.mrf.mxu0
        %606 = vdwg.mxu0
        %v607 = vmul.f32 %v529, 0.17677669
        %v608 = vmul.f32 %v534, 0.17677669
        %v609 = vmul.f32 %v539, 0.17677669
        %v610 = vmul.f32 %v544, 0.17677669
        %v611 = vmul.f32 %v549, 0.17677669
        %v612 = vmul.f32 %v554, 0.17677669
        %v613 = vmul.f32 %v559, 0.17677669
        %v614 = vmul.f32 %v564, 0.17677669
        %v615 = vmul.f32 %v569, 0.17677669
        %v616 = vmul.f32 %v574, 0.17677669
        %v617 = vmul.f32 %v579, 0.17677669
        %v618 = vmul.f32 %v584, 0.17677669
        %v619 = vmul.f32 %v589, 0.17677669
        %v620 = vmul.f32 %v594, 0.17677669
        %v621 = vmul.f32 %v599, 0.17677669
        %v622 = vmul.f32 %v604, 0.17677669
        %v623 = vld [vmem:[%s382] sm:$0xff]
        %v624 = vld [vmem:[%s382 + $0x8] sm:$0xff]
        %v625 = vld [vmem:[%s382 + $0x10] sm:$0xff]
        %v626 = vld [vmem:[%s382 + $0x18] sm:$0xff]
        %v627 = vld [vmem:[%s382 + $0x20] sm:$0xff]
        %v628 = vld [vmem:[%s382 + $0x28] sm:$0xff]
        %v629 = vld [vmem:[%s382 + $0x30] sm:$0xff]
        %v630 = vld [vmem:[%s382 + $0x38] sm:$0xff]
        %v631 = vld [vmem:[%s382 + $0x40] sm:$0xff]
        %v632 = vld [vmem:[%s382 + $0x48] sm:$0xff]
        %v633 = vld [vmem:[%s382 + $0x50] sm:$0xff]
        %v634 = vld [vmem:[%s382 + $0x58] sm:$0xff]
        %v635 = vld [vmem:[%s382 + $0x60] sm:$0xff]
        %v636 = vld [vmem:[%s382 + $0x68] sm:$0xff]
        %v637 = vld [vmem:[%s382 + $0x70] sm:$0xff]
        %v638 = vld [vmem:[%s382 + $0x78] sm:$0xff]
        %v639 = vld [vmem:[%s5] sm:$0xff]
        %v640 = vld [vmem:[%s5 + $0x8] sm:$0xff]
        %v641 = vld [vmem:[%s5 + $0x10] sm:$0xff]
        %v642 = vld [vmem:[%s5 + $0x18] sm:$0xff]
        %v643 = vld [vmem:[%s6] sm:$0xff]
        %v644 = vld [vmem:[%s6 + $0x8] sm:$0xff]
        %v645 = vld [vmem:[%s6 + $0x10] sm:$0xff]
        %v646 = vld [vmem:[%s6 + $0x18] sm:$0xff]
        %v647 = vld [vmem:[%s7] sm:$0x1]
        %v648 = vld [vmem:[%s8] sm:$0x1]
        %v649 = vld [vmem:[%s2] sm:$0xff]
        %v651 = vsel %vm413, %v649, 0
        %v654 = vsel %vm413, %v607, 0
        %v657 = vsel %vm413, %v608, 0
        %v660 = vsel %vm413, %v609, 0
        %v663 = vsel %vm413, %v610, 0
        %v666 = vsel %vm413, %v611, 0
        %v669 = vsel %vm413, %v612, 0
        %v672 = vsel %vm413, %v613, 0
        %v675 = vsel %vm413, %v614, 0
        %v678 = vsel %vm413, %v615, 0
        %v681 = vsel %vm413, %v616, 0
        %v684 = vsel %vm413, %v617, 0
        %v687 = vsel %vm413, %v618, 0
        %v690 = vsel %vm413, %v619, 0
        %v693 = vsel %vm413, %v620, 0
        %v696 = vsel %vm413, %v621, 0
        %v699 = vsel %vm413, %v622, 0
        %701 = vmatprep.subr.mxu0 0.0
        %702 = vmatpush1.xpose.msra.mxu0 %v699
        %703 = vmatprep.subr.mxu0 0.0
        %704 = vmatpush1.xpose.msra.mxu0 %v696
        %705 = vmatprep.subr.mxu0 0.0
        %706 = vmatpush1.xpose.msra.mxu0 %v693
        %707 = vmatprep.subr.mxu0 0.0
        %708 = vmatpush1.xpose.msra.mxu0 %v690
        %709 = vmatprep.subr.mxu0 0.0
        %710 = vmatpush1.xpose.msra.mxu0 %v687
        %711 = vmatprep.subr.mxu0 0.0
        %712 = vmatpush1.xpose.msra.mxu0 %v684
        %713 = vmatprep.subr.mxu0 0.0
        %714 = vmatpush1.xpose.msra.mxu0 %v681
        %715 = vmatprep.subr.mxu0 0.0
        %716 = vmatpush1.xpose.msra.mxu0 %v678
        %717 = vmatprep.subr.mxu0 0.0
        %718 = vmatpush1.xpose.msra.mxu0 %v675
        %719 = vmatprep.subr.mxu0 0.0
        %720 = vmatpush1.xpose.msra.mxu0 %v672
        %721 = vmatprep.subr.mxu0 0.0
        %722 = vmatpush1.xpose.msra.mxu0 %v669
        %723 = vmatprep.subr.mxu0 0.0
        %724 = vmatpush1.xpose.msra.mxu0 %v666
        %725 = vmatprep.subr.mxu0 0.0
        %726 = vmatpush1.xpose.msra.mxu0 %v663
        %727 = vmatprep.subr.mxu0 0.0
        %728 = vmatpush1.xpose.msra.mxu0 %v660
        %729 = vmatprep.subr.mxu0 0.0
        %730 = vmatpush1.xpose.msra.mxu0 %v657
        %731 = vmatprep.subr.mxu0 0.0
        %732 = vmatpush1.xpose.msra.mxu0 %v654
        %733 = vmatprep.subr.mxu0 0.0
        %734 = vmatpush2.xpose.msra.mxu0 0.0
        %735 = vmatprep.subr.mxu0 0.0
        %736 = vmatpush2.xpose.msra.mxu0 0.0
        %737 = vmatprep.subr.mxu0 0.0
        %738 = vmatpush2.xpose.msra.mxu0 0.0
        %739 = vmatprep.subr.mxu0 0.0
        %740 = vmatpush2.xpose.msra.mxu0 0.0
        %741 = vmatprep.subr.mxu0 0.0
        %742 = vmatpush2.xpose.msra.mxu0 0.0
        %743 = vmatprep.subr.mxu0 0.0
        %744 = vmatpush2.xpose.msra.mxu0 0.0
        %745 = vmatprep.subr.mxu0 0.0
        %746 = vmatpush2.xpose.msra.mxu0 0.0
        %747 = vmatprep.subr.mxu0 0.0
        %748 = vmatpush2.xpose.msra.mxu0 0.0
        %749 = vmatprep.subr.mxu0 0.0
        %750 = vmatpush2.xpose.msra.mxu0 0.0
        %751 = vmatprep.subr.mxu0 0.0
        %752 = vmatpush2.xpose.msra.mxu0 0.0
        %753 = vmatprep.subr.mxu0 0.0
        %754 = vmatpush2.xpose.msra.mxu0 0.0
        %755 = vmatprep.subr.mxu0 0.0
        %756 = vmatpush2.xpose.msra.mxu0 0.0
        %757 = vmatprep.subr.mxu0 0.0
        %758 = vmatpush2.xpose.msra.mxu0 0.0
        %759 = vmatprep.subr.mxu0 0.0
        %760 = vmatpush2.xpose.msra.mxu0 0.0
        %761 = vmatprep.subr.mxu0 0.0
        %762 = vmatpush2.xpose.msra.mxu0 0.0
        %763 = vmatprep.subr.mxu0 0.0
        %764 = vmatpush2.xpose.msra.mxu0 0.0
        %765 = vmatprep.mubr.f32.mxu0 0.0
        %766 = vmatmul.mubr.f32.gmra.mxu0 %v651
        %v767 = vpop.f32.mrf.mxu0
        %v768 = vadd.f32 0.0, %v767
        %v769 = vpop.f32.mrf.mxu0
        %770 = vdwg.mxu0
        %771 = vadd.xlane.f32.xlu0 %v768
        %v772 = vpop.xlane.xlu0 %771
        %v773 = vrot.slane %v772, 4
        %v774 = vadd.f32 %v772, %v773
        %v775 = vrot.slane %v774, 2
        %v776 = vadd.f32 %v774, %v775
        %v777 = vrot.slane %v776, 1
        %v778 = vadd.f32 %v776, %v777
        %v779 = vrcp.pop %v772
        %v780 = vmul.f32 %v778, %v779
        %v781 = vmul.f32 %v768, %v780
        %v782 = vrot.slane %v781, 4
        %v783 = vmax.f32 %v781, %v782
        %v784 = vrot.slane %v783, 2
        %v785 = vmax.f32 %v783, %v784
        %v786 = vrot.slane %v785, 1
        %v787 = vmax.f32 %v785, %v786
        %v788 = vsub.f32 %v781, %v787
        %v789 = vmul.f32 %v788, 1.442695
        %v790 = vpow.pop %v789
        %v791 = vrot.slane %v790, 4
        %v792 = vadd.f32 %v790, %v791
        %v793 = vrot.slane %v792, 2
        %v794 = vadd.f32 %v792, %v793
        %v795 = vrot.slane %v794, 1
        %v796 = vadd.f32 %v794, %v795
        %v797 = vrcp.pop %v796
        %v798 = vmul.f32 %v790, %v797
        %v799 = vxor.u32 %v781, 2147483648
        %v800 = vmul.f32 %v799, 1.442695
        %v801 = vpow.pop %v800
        %v802 = vadd.f32 %v801, 1.0
        %v803 = vrcp.pop %v802
        %v804 = vmul.f32 1.0, %v803
        %v805 = vmul.f32 %v798, %v804
        %806 = vmatprep.subr.mxu0 0.0
        %807 = vmatpush1.msra.mxu0 %v638
        %808 = vmatprep.subr.mxu0 0.0
        %809 = vmatpush1.msra.mxu0 %v637
        %810 = vmatprep.subr.mxu0 0.0
        %811 = vmatpush1.msra.mxu0 %v636
        %812 = vmatprep.subr.mxu0 0.0
        %813 = vmatpush1.msra.mxu0 %v635
        %814 = vmatprep.subr.mxu0 0.0
        %815 = vmatpush1.msra.mxu0 %v634
        %816 = vmatprep.subr.mxu0 0.0
        %817 = vmatpush1.msra.mxu0 %v633
        %818 = vmatprep.subr.mxu0 0.0
        %819 = vmatpush1.msra.mxu0 %v632
        %820 = vmatprep.subr.mxu0 0.0
        %821 = vmatpush1.msra.mxu0 %v631
        %822 = vmatprep.subr.mxu0 0.0
        %823 = vmatpush1.msra.mxu0 %v630
        %824 = vmatprep.subr.mxu0 0.0
        %825 = vmatpush1.msra.mxu0 %v629
        %826 = vmatprep.subr.mxu0 0.0
        %827 = vmatpush1.msra.mxu0 %v628
        %828 = vmatprep.subr.mxu0 0.0
        %829 = vmatpush1.msra.mxu0 %v627
        %830 = vmatprep.subr.mxu0 0.0
        %831 = vmatpush1.msra.mxu0 %v626
        %832 = vmatprep.subr.mxu0 0.0
        %833 = vmatpush1.msra.mxu0 %v625
        %834 = vmatprep.subr.mxu0 0.0
        %835 = vmatpush1.msra.mxu0 %v624
        %836 = vmatprep.subr.mxu0 0.0
        %837 = vmatpush1.msra.mxu0 %v623
        %838 = vmatprep.subr.mxu0 0.0
        %839 = vmatpush2.msra.mxu0 0.0
        %840 = vmatprep.subr.mxu0 0.0
        %841 = vmatpush2.msra.mxu0 0.0
        %842 = vmatprep.subr.mxu0 0.0
        %843 = vmatpush2.msra.mxu0 0.0
        %844 = vmatprep.subr.mxu0 0.0
        %845 = vmatpush2.msra.mxu0 0.0
        %846 = vmatprep.subr.mxu0 0.0
        %847 = vmatpush2.msra.mxu0 0.0
        %848 = vmatprep.subr.mxu0 0.0
        %849 = vmatpush2.msra.mxu0 0.0
        %850 = vmatprep.subr.mxu0 0.0
        %851 = vmatpush2.msra.mxu0 0.0
        %852 = vmatprep.subr.mxu0 0.0
        %853 = vmatpush2.msra.mxu0 0.0
        %854 = vmatprep.subr.mxu0 0.0
        %855 = vmatpush2.msra.mxu0 0.0
        %856 = vmatprep.subr.mxu0 0.0
        %857 = vmatpush2.msra.mxu0 0.0
        %858 = vmatprep.subr.mxu0 0.0
        %859 = vmatpush2.msra.mxu0 0.0
        %860 = vmatprep.subr.mxu0 0.0
        %861 = vmatpush2.msra.mxu0 0.0
        %862 = vmatprep.subr.mxu0 0.0
        %863 = vmatpush2.msra.mxu0 0.0
        %864 = vmatprep.subr.mxu0 0.0
        %865 = vmatpush2.msra.mxu0 0.0
        %866 = vmatprep.subr.mxu0 0.0
        %867 = vmatpush2.msra.mxu0 0.0
        %868 = vmatprep.subr.mxu0 0.0
        %869 = vmatpush2.msra.mxu0 0.0
        %870 = vmatprep.mubr.f32.mxu0 0.0
        %871 = vmatmul.mubr.f32.gmra.mxu0 %v805
        %v872 = vpop.f32.mrf.mxu0
        %v873 = vadd.f32 0.0, %v872
        %v874 = vpop.f32.mrf.mxu0
        %875 = vdwg.mxu0
        %v876 = vmul.f32 %v873, 0.03125
        %v878 = vlaneseq
        %v879 = vshrl.u32 %v878, 7
        %v880 = vsub.s32 0, %v879
        %v881 = vrot.slane %v647, %v880
        %v884 = vsel %vm413, %v876, 0
        %886 = vmatprep.subr.mxu0 0.0
        %887 = vmatpush1.msra.mxu0 0.0
        %888 = vmatprep.subr.mxu0 0.0
        %889 = vmatpush1.msra.mxu0 0.0
        %890 = vmatprep.subr.mxu0 0.0
        %891 = vmatpush1.msra.mxu0 0.0
        %892 = vmatprep.subr.mxu0 0.0
        %893 = vmatpush1.msra.mxu0 0.0
        %894 = vmatprep.subr.mxu0 0.0
        %895 = vmatpush1.msra.mxu0 0.0
        %896 = vmatprep.subr.mxu0 0.0
        %897 = vmatpush1.msra.mxu0 0.0
        %898 = vmatprep.subr.mxu0 0.0
        %899 = vmatpush1.msra.mxu0 0.0
        %900 = vmatprep.subr.mxu0 0.0
        %901 = vmatpush1.msra.mxu0 0.0
        %902 = vmatprep.subr.mxu0 0.0
        %903 = vmatpush1.msra.mxu0 0.0
        %904 = vmatprep.subr.mxu0 0.0
        %905 = vmatpush1.msra.mxu0 0.0
        %906 = vmatprep.subr.mxu0 0.0
        %907 = vmatpush1.msra.mxu0 0.0
        %908 = vmatprep.subr.mxu0 0.0
        %909 = vmatpush1.msra.mxu0 0.0
        %910 = vmatprep.subr.mxu0 0.0
        %911 = vmatpush1.msra.mxu0 %v642
        %912 = vmatprep.subr.mxu0 0.0
        %913 = vmatpush1.msra.mxu0 %v641
        %914 = vmatprep.subr.mxu0 0.0
        %915 = vmatpush1.msra.mxu0 %v640
        %916 = vmatprep.subr.mxu0 0.0
        %917 = vmatpush1.msra.mxu0 %v639
        %918 = vmatprep.subr.mxu0 0.0
        %919 = vmatpush2.msra.mxu0 0.0
        %920 = vmatprep.subr.mxu0 0.0
        %921 = vmatpush2.msra.mxu0 0.0
        %922 = vmatprep.subr.mxu0 0.0
        %923 = vmatpush2.msra.mxu0 0.0
        %924 = vmatprep.subr.mxu0 0.0
        %925 = vmatpush2.msra.mxu0 0.0
        %926 = vmatprep.subr.mxu0 0.0
        %927 = vmatpush2.msra.mxu0 0.0
        %928 = vmatprep.subr.mxu0 0.0
        %929 = vmatpush2.msra.mxu0 0.0
        %930 = vmatprep.subr.mxu0 0.0
        %931 = vmatpush2.msra.mxu0 0.0
        %932 = vmatprep.subr.mxu0 0.0
        %933 = vmatpush2.msra.mxu0 0.0
        %934 = vmatprep.subr.mxu0 0.0
        %935 = vmatpush2.msra.mxu0 0.0
        %936 = vmatprep.subr.mxu0 0.0
        %937 = vmatpush2.msra.mxu0 0.0
        %938 = vmatprep.subr.mxu0 0.0
        %939 = vmatpush2.msra.mxu0 0.0
        %940 = vmatprep.subr.mxu0 0.0
        %941 = vmatpush2.msra.mxu0 0.0
        %942 = vmatprep.subr.mxu0 0.0
        %943 = vmatpush2.msra.mxu0 0.0
        %944 = vmatprep.subr.mxu0 0.0
        %945 = vmatpush2.msra.mxu0 0.0
        %946 = vmatprep.subr.mxu0 0.0
        %947 = vmatpush2.msra.mxu0 0.0
        %948 = vmatprep.subr.mxu0 0.0
        %949 = vmatpush2.msra.mxu0 0.0
        %950 = vmatprep.mubr.f32.mxu0 0.0
        %951 = vmatmul.mubr.f32.gmra.mxu0 %v884
        %v952 = vpop.f32.mrf.mxu0
        %v953 = vadd.f32 %v881, %v952
        %v954 = vpop.f32.mrf.mxu0
        %955 = vdwg.mxu0
        %v957 = vlaneseq
        %v958 = vshrl.u32 %v957, 7
        %v959 = vsub.s32 0, %v958
        %v960 = vrot.slane %v648, %v959
        %962 = vmatprep.subr.mxu0 0.0
        %963 = vmatpush1.msra.mxu0 0.0
        %964 = vmatprep.subr.mxu0 0.0
        %965 = vmatpush1.msra.mxu0 0.0
        %966 = vmatprep.subr.mxu0 0.0
        %967 = vmatpush1.msra.mxu0 0.0
        %968 = vmatprep.subr.mxu0 0.0
        %969 = vmatpush1.msra.mxu0 0.0
        %970 = vmatprep.subr.mxu0 0.0
        %971 = vmatpush1.msra.mxu0 0.0
        %972 = vmatprep.subr.mxu0 0.0
        %973 = vmatpush1.msra.mxu0 0.0
        %974 = vmatprep.subr.mxu0 0.0
        %975 = vmatpush1.msra.mxu0 0.0
        %976 = vmatprep.subr.mxu0 0.0
        %977 = vmatpush1.msra.mxu0 0.0
        %978 = vmatprep.subr.mxu0 0.0
        %979 = vmatpush1.msra.mxu0 0.0
        %980 = vmatprep.subr.mxu0 0.0
        %981 = vmatpush1.msra.mxu0 0.0
        %982 = vmatprep.subr.mxu0 0.0
        %983 = vmatpush1.msra.mxu0 0.0
        %984 = vmatprep.subr.mxu0 0.0
        %985 = vmatpush1.msra.mxu0 0.0
        %986 = vmatprep.subr.mxu0 0.0
        %987 = vmatpush1.msra.mxu0 %v646
        %988 = vmatprep.subr.mxu0 0.0
        %989 = vmatpush1.msra.mxu0 %v645
        %990 = vmatprep.subr.mxu0 0.0
        %991 = vmatpush1.msra.mxu0 %v644
        %992 = vmatprep.subr.mxu0 0.0
        %993 = vmatpush1.msra.mxu0 %v643
        %994 = vmatprep.subr.mxu0 0.0
        %995 = vmatpush2.msra.mxu0 0.0
        %996 = vmatprep.subr.mxu0 0.0
        %997 = vmatpush2.msra.mxu0 0.0
        %998 = vmatprep.subr.mxu0 0.0
        %999 = vmatpush2.msra.mxu0 0.0
        %1000 = vmatprep.subr.mxu0 0.0
        %1001 = vmatpush2.msra.mxu0 0.0
        %1002 = vmatprep.subr.mxu0 0.0
        %1003 = vmatpush2.msra.mxu0 0.0
        %1004 = vmatprep.subr.mxu0 0.0
        %1005 = vmatpush2.msra.mxu0 0.0
        %1006 = vmatprep.subr.mxu0 0.0
        %1007 = vmatpush2.msra.mxu0 0.0
        %1008 = vmatprep.subr.mxu0 0.0
        %1009 = vmatpush2.msra.mxu0 0.0
        %1010 = vmatprep.subr.mxu0 0.0
        %1011 = vmatpush2.msra.mxu0 0.0
        %1012 = vmatprep.subr.mxu0 0.0
        %1013 = vmatpush2.msra.mxu0 0.0
        %1014 = vmatprep.subr.mxu0 0.0
        %1015 = vmatpush2.msra.mxu0 0.0
        %1016 = vmatprep.subr.mxu0 0.0
        %1017 = vmatpush2.msra.mxu0 0.0
        %1018 = vmatprep.subr.mxu0 0.0
        %1019 = vmatpush2.msra.mxu0 0.0
        %1020 = vmatprep.subr.mxu0 0.0
        %1021 = vmatpush2.msra.mxu0 0.0
        %1022 = vmatprep.subr.mxu0 0.0
        %1023 = vmatpush2.msra.mxu0 0.0
        %1024 = vmatprep.subr.mxu0 0.0
        %1025 = vmatpush2.msra.mxu0 0.0
        %1026 = vmatprep.mubr.f32.mxu0 0.0
        %1027 = vmatmul.mubr.f32.gmra.mxu0 %v651
        %v1028 = vpop.f32.mrf.mxu0
        %v1029 = vadd.f32 %v960, %v1028
        %v1030 = vpop.f32.mrf.mxu0
        %1031 = vdwg.mxu0
        %v1032 = vadd.f32 %v953, %v1029
        %v1033 = vxor.u32 %v1032, 2147483648
        %v1034 = vmul.f32 %v1033, 1.442695
        %v1035 = vpow.pop %v1034
        %v1036 = vadd.f32 %v1035, 1.0
        %v1037 = vrcp.pop %v1036
        %v1038 = vmul.f32 1.0, %v1037
        %1040 = vrot.lane.b32.xlu0 %v1029, 64
        %v1041 = vpop.permute.xlu0 %1040
        %v1043 = vmul.f32 %v1038, %v1041
        %1045 = vrot.lane.b32.xlu0 %v1043, 64
        %v1046 = vpop.permute.xlu0 %1045
        %v1048 = vadd.f32 %v953, %v1046
        %v1049 = vtanh.pop %v1048
        %v1050 = vsub.f32 1.0, %v1038
        %1052 = vrot.lane.b32.xlu0 %v1049, 96
        %v1053 = vpop.permute.xlu0 %1052
        %v1055 = vmul.f32 %v1050, %v1053
        %1056 = vrot.lane.b32.xlu0 %v649, 32
        %v1057 = vpop.permute.xlu0 %1056
        %v1059 = vmul.f32 %v1038, %v1057
        %v1060 = vadd.f32 %v1055, %v1059
        %1062 = vrot.lane.b32.xlu0 %v1060, 96
        %v1063 = vpop.permute.xlu0 %1062
        %v1064 = vsel %vm413, %v1063, 0
        %1066 = vmatprep.subr.mxu0 0.0
        %1067 = vmatpush1.xpose.msra.mxu0 %v699
        %1068 = vmatprep.subr.mxu0 0.0
        %1069 = vmatpush1.xpose.msra.mxu0 %v696
        %1070 = vmatprep.subr.mxu0 0.0
        %1071 = vmatpush1.xpose.msra.mxu0 %v693
        %1072 = vmatprep.subr.mxu0 0.0
        %1073 = vmatpush1.xpose.msra.mxu0 %v690
        %1074 = vmatprep.subr.mxu0 0.0
        %1075 = vmatpush1.xpose.msra.mxu0 %v687
        %1076 = vmatprep.subr.mxu0 0.0
        %1077 = vmatpush1.xpose.msra.mxu0 %v684
        %1078 = vmatprep.subr.mxu0 0.0
        %1079 = vmatpush1.xpose.msra.mxu0 %v681
        %1080 = vmatprep.subr.mxu0 0.0
        %1081 = vmatpush1.xpose.msra.mxu0 %v678
        %1082 = vmatprep.subr.mxu0 0.0
        %1083 = vmatpush1.xpose.msra.mxu0 %v675
        %1084 = vmatprep.subr.mxu0 0.0
        %1085 = vmatpush1.xpose.msra.mxu0 %v672
        %1086 = vmatprep.subr.mxu0 0.0
        %1087 = vmatpush1.xpose.msra.mxu0 %v669
        %1088 = vmatprep.subr.mxu0 0.0
        %1089 = vmatpush1.xpose.msra.mxu0 %v666
        %1090 = vmatprep.subr.mxu0 0.0
        %1091 = vmatpush1.xpose.msra.mxu0 %v663
        %1092 = vmatprep.subr.mxu0 0.0
        %1093 = vmatpush1.xpose.msra.mxu0 %v660
        %1094 = vmatprep.subr.mxu0 0.0
        %1095 = vmatpush1.xpose.msra.mxu0 %v657
        %1096 = vmatprep.subr.mxu0 0.0
        %1097 = vmatpush1.xpose.msra.mxu0 %v654
        %1098 = vmatprep.subr.mxu0 0.0
        %1099 = vmatpush2.xpose.msra.mxu0 0.0
        %1100 = vmatprep.subr.mxu0 0.0
        %1101 = vmatpush2.xpose.msra.mxu0 0.0
        %1102 = vmatprep.subr.mxu0 0.0
        %1103 = vmatpush2.xpose.msra.mxu0 0.0
        %1104 = vmatprep.subr.mxu0 0.0
        %1105 = vmatpush2.xpose.msra.mxu0 0.0
        %1106 = vmatprep.subr.mxu0 0.0
        %1107 = vmatpush2.xpose.msra.mxu0 0.0
        %1108 = vmatprep.subr.mxu0 0.0
        %1109 = vmatpush2.xpose.msra.mxu0 0.0
        %1110 = vmatprep.subr.mxu0 0.0
        %1111 = vmatpush2.xpose.msra.mxu0 0.0
        %1112 = vmatprep.subr.mxu0 0.0
        %1113 = vmatpush2.xpose.msra.mxu0 0.0
        %1114 = vmatprep.subr.mxu0 0.0
        %1115 = vmatpush2.xpose.msra.mxu0 0.0
        %1116 = vmatprep.subr.mxu0 0.0
        %1117 = vmatpush2.xpose.msra.mxu0 0.0
        %1118 = vmatprep.subr.mxu0 0.0
        %1119 = vmatpush2.xpose.msra.mxu0 0.0
        %1120 = vmatprep.subr.mxu0 0.0
        %1121 = vmatpush2.xpose.msra.mxu0 0.0
        %1122 = vmatprep.subr.mxu0 0.0
        %1123 = vmatpush2.xpose.msra.mxu0 0.0
        %1124 = vmatprep.subr.mxu0 0.0
        %1125 = vmatpush2.xpose.msra.mxu0 0.0
        %1126 = vmatprep.subr.mxu0 0.0
        %1127 = vmatpush2.xpose.msra.mxu0 0.0
        %1128 = vmatprep.subr.mxu0 0.0
        %1129 = vmatpush2.xpose.msra.mxu0 0.0
        %1130 = vmatprep.mubr.f32.mxu0 0.0
        %1131 = vmatmul.mubr.f32.gmra.mxu0 %v1064
        %v1132 = vpop.f32.mrf.mxu0
        %v1133 = vadd.f32 0.0, %v1132
        %v1134 = vpop.f32.mrf.mxu0
        %1135 = vdwg.mxu0
        %1136 = vadd.xlane.f32.xlu0 %v1133
        %v1137 = vpop.xlane.xlu0 %1136
        %v1138 = vrot.slane %v1137, 4
        %v1139 = vadd.f32 %v1137, %v1138
        %v1140 = vrot.slane %v1139, 2
        %v1141 = vadd.f32 %v1139, %v1140
        %v1142 = vrot.slane %v1141, 1
        %v1143 = vadd.f32 %v1141, %v1142
        %v1144 = vrcp.pop %v1137
        %v1145 = vmul.f32 %v1143, %v1144
        %v1146 = vmul.f32 %v1133, %v1145
        %v1147 = vrot.slane %v1146, 4
        %v1148 = vmax.f32 %v1146, %v1147
        %v1149 = vrot.slane %v1148, 2
        %v1150 = vmax.f32 %v1148, %v1149
        %v1151 = vrot.slane %v1150, 1
        %v1152 = vmax.f32 %v1150, %v1151
        %v1153 = vsub.f32 %v1146, %v1152
        %v1154 = vmul.f32 %v1153, 1.442695
        %v1155 = vpow.pop %v1154
        %v1156 = vrot.slane %v1155, 4
        %v1157 = vadd.f32 %v1155, %v1156
        %v1158 = vrot.slane %v1157, 2
        %v1159 = vadd.f32 %v1157, %v1158
        %v1160 = vrot.slane %v1159, 1
        %v1161 = vadd.f32 %v1159, %v1160
        %v1162 = vrcp.pop %v1161
        %v1163 = vmul.f32 %v1155, %v1162
        %v1164 = vxor.u32 %v1146, 2147483648
        %v1165 = vmul.f32 %v1164, 1.442695
        %v1166 = vpow.pop %v1165
        %v1167 = vadd.f32 %v1166, 1.0
        %v1168 = vrcp.pop %v1167
        %v1169 = vmul.f32 1.0, %v1168
        %v1170 = vmul.f32 %v1163, %v1169
        %1171 = vmatprep.subr.mxu0 0.0
        %1172 = vmatpush1.msra.mxu0 %v638
        %1173 = vmatprep.subr.mxu0 0.0
        %1174 = vmatpush1.msra.mxu0 %v637
        %1175 = vmatprep.subr.mxu0 0.0
        %1176 = vmatpush1.msra.mxu0 %v636
        %1177 = vmatprep.subr.mxu0 0.0
        %1178 = vmatpush1.msra.mxu0 %v635
        %1179 = vmatprep.subr.mxu0 0.0
        %1180 = vmatpush1.msra.mxu0 %v634
        %1181 = vmatprep.subr.mxu0 0.0
        %1182 = vmatpush1.msra.mxu0 %v633
        %1183 = vmatprep.subr.mxu0 0.0
        %1184 = vmatpush1.msra.mxu0 %v632
        %1185 = vmatprep.subr.mxu0 0.0
        %1186 = vmatpush1.msra.mxu0 %v631
        %1187 = vmatprep.subr.mxu0 0.0
        %1188 = vmatpush1.msra.mxu0 %v630
        %1189 = vmatprep.subr.mxu0 0.0
        %1190 = vmatpush1.msra.mxu0 %v629
        %1191 = vmatprep.subr.mxu0 0.0
        %1192 = vmatpush1.msra.mxu0 %v628
        %1193 = vmatprep.subr.mxu0 0.0
        %1194 = vmatpush1.msra.mxu0 %v627
        %1195 = vmatprep.subr.mxu0 0.0
        %1196 = vmatpush1.msra.mxu0 %v626
        %1197 = vmatprep.subr.mxu0 0.0
        %1198 = vmatpush1.msra.mxu0 %v625
        %1199 = vmatprep.subr.mxu0 0.0
        %1200 = vmatpush1.msra.mxu0 %v624
        %1201 = vmatprep.subr.mxu0 0.0
        %1202 = vmatpush1.msra.mxu0 %v623
        %1203 = vmatprep.subr.mxu0 0.0
        %1204 = vmatpush2.msra.mxu0 0.0
        %1205 = vmatprep.subr.mxu0 0.0
        %1206 = vmatpush2.msra.mxu0 0.0
        %1207 = vmatprep.subr.mxu0 0.0
        %1208 = vmatpush2.msra.mxu0 0.0
        %1209 = vmatprep.subr.mxu0 0.0
        %1210 = vmatpush2.msra.mxu0 0.0
        %1211 = vmatprep.subr.mxu0 0.0
        %1212 = vmatpush2.msra.mxu0 0.0
        %1213 = vmatprep.subr.mxu0 0.0
        %1214 = vmatpush2.msra.mxu0 0.0
        %1215 = vmatprep.subr.mxu0 0.0
        %1216 = vmatpush2.msra.mxu0 0.0
        %1217 = vmatprep.subr.mxu0 0.0
        %1218 = vmatpush2.msra.mxu0 0.0
        %1219 = vmatprep.subr.mxu0 0.0
        %1220 = vmatpush2.msra.mxu0 0.0
        %1221 = vmatprep.subr.mxu0 0.0
        %1222 = vmatpush2.msra.mxu0 0.0
        %1223 = vmatprep.subr.mxu0 0.0
        %1224 = vmatpush2.msra.mxu0 0.0
        %1225 = vmatprep.subr.mxu0 0.0
        %1226 = vmatpush2.msra.mxu0 0.0
        %1227 = vmatprep.subr.mxu0 0.0
        %1228 = vmatpush2.msra.mxu0 0.0
        %1229 = vmatprep.subr.mxu0 0.0
        %1230 = vmatpush2.msra.mxu0 0.0
        %1231 = vmatprep.subr.mxu0 0.0
        %1232 = vmatpush2.msra.mxu0 0.0
        %1233 = vmatprep.subr.mxu0 0.0
        %1234 = vmatpush2.msra.mxu0 0.0
        %1235 = vmatprep.mubr.f32.mxu0 0.0
        %1236 = vmatmul.mubr.f32.gmra.mxu0 %v1170
        %v1237 = vpop.f32.mrf.mxu0
        %v1238 = vadd.f32 0.0, %v1237
        %v1239 = vpop.f32.mrf.mxu0
        %1240 = vdwg.mxu0
        %v1241 = vmul.f32 %v1238, 0.03125
        %v1243 = vsel %vm413, %v1241, 0
        %1245 = vmatprep.subr.mxu0 0.0
        %1246 = vmatpush1.msra.mxu0 0.0
        %1247 = vmatprep.subr.mxu0 0.0
        %1248 = vmatpush1.msra.mxu0 0.0
        %1249 = vmatprep.subr.mxu0 0.0
        %1250 = vmatpush1.msra.mxu0 0.0
        %1251 = vmatprep.subr.mxu0 0.0
        %1252 = vmatpush1.msra.mxu0 0.0
        %1253 = vmatprep.subr.mxu0 0.0
        %1254 = vmatpush1.msra.mxu0 0.0
        %1255 = vmatprep.subr.mxu0 0.0
        %1256 = vmatpush1.msra.mxu0 0.0
        %1257 = vmatprep.subr.mxu0 0.0
        %1258 = vmatpush1.msra.mxu0 0.0
        %1259 = vmatprep.subr.mxu0 0.0
        %1260 = vmatpush1.msra.mxu0 0.0
        %1261 = vmatprep.subr.mxu0 0.0
        %1262 = vmatpush1.msra.mxu0 0.0
        %1263 = vmatprep.subr.mxu0 0.0
        %1264 = vmatpush1.msra.mxu0 0.0
        %1265 = vmatprep.subr.mxu0 0.0
        %1266 = vmatpush1.msra.mxu0 0.0
        %1267 = vmatprep.subr.mxu0 0.0
        %1268 = vmatpush1.msra.mxu0 0.0
        %1269 = vmatprep.subr.mxu0 0.0
        %1270 = vmatpush1.msra.mxu0 %v642
        %1271 = vmatprep.subr.mxu0 0.0
        %1272 = vmatpush1.msra.mxu0 %v641
        %1273 = vmatprep.subr.mxu0 0.0
        %1274 = vmatpush1.msra.mxu0 %v640
        %1275 = vmatprep.subr.mxu0 0.0
        %1276 = vmatpush1.msra.mxu0 %v639
        %1277 = vmatprep.subr.mxu0 0.0
        %1278 = vmatpush2.msra.mxu0 0.0
        %1279 = vmatprep.subr.mxu0 0.0
        %1280 = vmatpush2.msra.mxu0 0.0
        %1281 = vmatprep.subr.mxu0 0.0
        %1282 = vmatpush2.msra.mxu0 0.0
        %1283 = vmatprep.subr.mxu0 0.0
        %1284 = vmatpush2.msra.mxu0 0.0
        %1285 = vmatprep.subr.mxu0 0.0
        %1286 = vmatpush2.msra.mxu0 0.0
        %1287 = vmatprep.subr.mxu0 0.0
        %1288 = vmatpush2.msra.mxu0 0.0
        %1289 = vmatprep.subr.mxu0 0.0
        %1290 = vmatpush2.msra.mxu0 0.0
        %1291 = vmatprep.subr.mxu0 0.0
        %1292 = vmatpush2.msra.mxu0 0.0
        %1293 = vmatprep.subr.mxu0 0.0
        %1294 = vmatpush2.msra.mxu0 0.0
        %1295 = vmatprep.subr.mxu0 0.0
        %1296 = vmatpush2.msra.mxu0 0.0
        %1297 = vmatprep.subr.mxu0 0.0
        %1298 = vmatpush2.msra.mxu0 0.0
        %1299 = vmatprep.subr.mxu0 0.0
        %1300 = vmatpush2.msra.mxu0 0.0
        %1301 = vmatprep.subr.mxu0 0.0
        %1302 = vmatpush2.msra.mxu0 0.0
        %1303 = vmatprep.subr.mxu0 0.0
        %1304 = vmatpush2.msra.mxu0 0.0
        %1305 = vmatprep.subr.mxu0 0.0
        %1306 = vmatpush2.msra.mxu0 0.0
        %1307 = vmatprep.subr.mxu0 0.0
        %1308 = vmatpush2.msra.mxu0 0.0
        %1309 = vmatprep.mubr.f32.mxu0 0.0
        %1310 = vmatmul.mubr.f32.gmra.mxu0 %v1243
        %v1311 = vpop.f32.mrf.mxu0
        %v1312 = vadd.f32 %v881, %v1311
        %v1313 = vpop.f32.mrf.mxu0
        %1314 = vdwg.mxu0
        %1315 = vmatprep.subr.mxu0 0.0
        %1316 = vmatpush1.msra.mxu0 0.0
        %1317 = vmatprep.subr.mxu0 0.0
        %1318 = vmatpush1.msra.mxu0 0.0
        %1319 = vmatprep.subr.mxu0 0.0
        %1320 = vmatpush1.msra.mxu0 0.0
        %1321 = vmatprep.subr.mxu0 0.0
        %1322 = vmatpush1.msra.mxu0 0.0
        %1323 = vmatprep.subr.mxu0 0.0
        %1324 = vmatpush1.msra.mxu0 0.0
        %1325 = vmatprep.subr.mxu0 0.0
        %1326 = vmatpush1.msra.mxu0 0.0
        %1327 = vmatprep.subr.mxu0 0.0
        %1328 = vmatpush1.msra.mxu0 0.0
        %1329 = vmatprep.subr.mxu0 0.0
        %1330 = vmatpush1.msra.mxu0 0.0
        %1331 = vmatprep.subr.mxu0 0.0
        %1332 = vmatpush1.msra.mxu0 0.0
        %1333 = vmatprep.subr.mxu0 0.0
        %1334 = vmatpush1.msra.mxu0 0.0
        %1335 = vmatprep.subr.mxu0 0.0
        %1336 = vmatpush1.msra.mxu0 0.0
        %1337 = vmatprep.subr.mxu0 0.0
        %1338 = vmatpush1.msra.mxu0 0.0
        %1339 = vmatprep.subr.mxu0 0.0
        %1340 = vmatpush1.msra.mxu0 %v646
        %1341 = vmatprep.subr.mxu0 0.0
        %1342 = vmatpush1.msra.mxu0 %v645
        %1343 = vmatprep.subr.mxu0 0.0
        %1344 = vmatpush1.msra.mxu0 %v644
        %1345 = vmatprep.subr.mxu0 0.0
        %1346 = vmatpush1.msra.mxu0 %v643
        %1347 = vmatprep.subr.mxu0 0.0
        %1348 = vmatpush2.msra.mxu0 0.0
        %1349 = vmatprep.subr.mxu0 0.0
        %1350 = vmatpush2.msra.mxu0 0.0
        %1351 = vmatprep.subr.mxu0 0.0
        %1352 = vmatpush2.msra.mxu0 0.0
        %1353 = vmatprep.subr.mxu0 0.0
        %1354 = vmatpush2.msra.mxu0 0.0
        %1355 = vmatprep.subr.mxu0 0.0
        %1356 = vmatpush2.msra.mxu0 0.0
        %1357 = vmatprep.subr.mxu0 0.0
        %1358 = vmatpush2.msra.mxu0 0.0
        %1359 = vmatprep.subr.mxu0 0.0
        %1360 = vmatpush2.msra.mxu0 0.0
        %1361 = vmatprep.subr.mxu0 0.0
        %1362 = vmatpush2.msra.mxu0 0.0
        %1363 = vmatprep.subr.mxu0 0.0
        %1364 = vmatpush2.msra.mxu0 0.0
        %1365 = vmatprep.subr.mxu0 0.0
        %1366 = vmatpush2.msra.mxu0 0.0
        %1367 = vmatprep.subr.mxu0 0.0
        %1368 = vmatpush2.msra.mxu0 0.0
        %1369 = vmatprep.subr.mxu0 0.0
        %1370 = vmatpush2.msra.mxu0 0.0
        %1371 = vmatprep.subr.mxu0 0.0
        %1372 = vmatpush2.msra.mxu0 0.0
        %1373 = vmatprep.subr.mxu0 0.0
        %1374 = vmatpush2.msra.mxu0 0.0
        %1375 = vmatprep.subr.mxu0 0.0
        %1376 = vmatpush2.msra.mxu0 0.0
        %1377 = vmatprep.subr.mxu0 0.0
        %1378 = vmatpush2.msra.mxu0 0.0
        %1379 = vmatprep.mubr.f32.mxu0 0.0
        %1380 = vmatmul.mubr.f32.gmra.mxu0 %v1064
        %v1381 = vpop.f32.mrf.mxu0
        %v1382 = vadd.f32 %v960, %v1381
        %v1383 = vpop.f32.mrf.mxu0
        %1384 = vdwg.mxu0
        %v1385 = vadd.f32 %v1312, %v1382
        %v1386 = vxor.u32 %v1385, 2147483648
        %v1387 = vmul.f32 %v1386, 1.442695
        %v1388 = vpow.pop %v1387
        %v1389 = vadd.f32 %v1388, 1.0
        %v1390 = vrcp.pop %v1389
        %v1391 = vmul.f32 1.0, %v1390
        %1393 = vrot.lane.b32.xlu0 %v1382, 64
        %v1394 = vpop.permute.xlu0 %1393
        %v1396 = vmul.f32 %v1391, %v1394
        %1398 = vrot.lane.b32.xlu0 %v1396, 64
        %v1399 = vpop.permute.xlu0 %1398
        %v1401 = vadd.f32 %v1312, %v1399
        %v1402 = vtanh.pop %v1401
        %v1403 = vsub.f32 1.0, %v1391
        %1405 = vrot.lane.b32.xlu0 %v1402, 96
        %v1406 = vpop.permute.xlu0 %1405
        %v1408 = vmul.f32 %v1403, %v1406
        %v1409 = vmul.f32 %v1391, %v1060
        %v1410 = vadd.f32 %v1408, %v1409
        %1412 = vrot.lane.b32.xlu0 %v1410, 96
        %v1413 = vpop.permute.xlu0 %1412
        %v1414 = vsel %vm413, %v1413, 0
        %1416 = vmatprep.subr.mxu0 0.0
        %1417 = vmatpush1.xpose.msra.mxu0 %v699
        %1418 = vmatprep.subr.mxu0 0.0
        %1419 = vmatpush1.xpose.msra.mxu0 %v696
        %1420 = vmatprep.subr.mxu0 0.0
        %1421 = vmatpush1.xpose.msra.mxu0 %v693
        %1422 = vmatprep.subr.mxu0 0.0
        %1423 = vmatpush1.xpose.msra.mxu0 %v690
        %1424 = vmatprep.subr.mxu0 0.0
        %1425 = vmatpush1.xpose.msra.mxu0 %v687
        %1426 = vmatprep.subr.mxu0 0.0
        %1427 = vmatpush1.xpose.msra.mxu0 %v684
        %1428 = vmatprep.subr.mxu0 0.0
        %1429 = vmatpush1.xpose.msra.mxu0 %v681
        %1430 = vmatprep.subr.mxu0 0.0
        %1431 = vmatpush1.xpose.msra.mxu0 %v678
        %1432 = vmatprep.subr.mxu0 0.0
        %1433 = vmatpush1.xpose.msra.mxu0 %v675
        %1434 = vmatprep.subr.mxu0 0.0
        %1435 = vmatpush1.xpose.msra.mxu0 %v672
        %1436 = vmatprep.subr.mxu0 0.0
        %1437 = vmatpush1.xpose.msra.mxu0 %v669
        %1438 = vmatprep.subr.mxu0 0.0
        %1439 = vmatpush1.xpose.msra.mxu0 %v666
        %1440 = vmatprep.subr.mxu0 0.0
        %1441 = vmatpush1.xpose.msra.mxu0 %v663
        %1442 = vmatprep.subr.mxu0 0.0
        %1443 = vmatpush1.xpose.msra.mxu0 %v660
        %1444 = vmatprep.subr.mxu0 0.0
        %1445 = vmatpush1.xpose.msra.mxu0 %v657
        %1446 = vmatprep.subr.mxu0 0.0
        %1447 = vmatpush1.xpose.msra.mxu0 %v654
        %1448 = vmatprep.subr.mxu0 0.0
        %1449 = vmatpush2.xpose.msra.mxu0 0.0
        %1450 = vmatprep.subr.mxu0 0.0
        %1451 = vmatpush2.xpose.msra.mxu0 0.0
        %1452 = vmatprep.subr.mxu0 0.0
        %1453 = vmatpush2.xpose.msra.mxu0 0.0
        %1454 = vmatprep.subr.mxu0 0.0
        %1455 = vmatpush2.xpose.msra.mxu0 0.0
        %1456 = vmatprep.subr.mxu0 0.0
        %1457 = vmatpush2.xpose.msra.mxu0 0.0
        %1458 = vmatprep.subr.mxu0 0.0
        %1459 = vmatpush2.xpose.msra.mxu0 0.0
        %1460 = vmatprep.subr.mxu0 0.0
        %1461 = vmatpush2.xpose.msra.mxu0 0.0
        %1462 = vmatprep.subr.mxu0 0.0
        %1463 = vmatpush2.xpose.msra.mxu0 0.0
        %1464 = vmatprep.subr.mxu0 0.0
        %1465 = vmatpush2.xpose.msra.mxu0 0.0
        %1466 = vmatprep.subr.mxu0 0.0
        %1467 = vmatpush2.xpose.msra.mxu0 0.0
        %1468 = vmatprep.subr.mxu0 0.0
        %1469 = vmatpush2.xpose.msra.mxu0 0.0
        %1470 = vmatprep.subr.mxu0 0.0
        %1471 = vmatpush2.xpose.msra.mxu0 0.0
        %1472 = vmatprep.subr.mxu0 0.0
        %1473 = vmatpush2.xpose.msra.mxu0 0.0
        %1474 = vmatprep.subr.mxu0 0.0
        %1475 = vmatpush2.xpose.msra.mxu0 0.0
        %1476 = vmatprep.subr.mxu0 0.0
        %1477 = vmatpush2.xpose.msra.mxu0 0.0
        %1478 = vmatprep.subr.mxu0 0.0
        %1479 = vmatpush2.xpose.msra.mxu0 0.0
        %1480 = vmatprep.mubr.f32.mxu0 0.0
        %1481 = vmatmul.mubr.f32.gmra.mxu0 %v1414
        %v1482 = vpop.f32.mrf.mxu0
        %v1483 = vadd.f32 0.0, %v1482
        %v1484 = vpop.f32.mrf.mxu0
        %1485 = vdwg.mxu0
        %1486 = vadd.xlane.f32.xlu0 %v1483
        %v1487 = vpop.xlane.xlu0 %1486
        %v1488 = vrot.slane %v1487, 4
        %v1489 = vadd.f32 %v1487, %v1488
        %v1490 = vrot.slane %v1489, 2
        %v1491 = vadd.f32 %v1489, %v1490
        %v1492 = vrot.slane %v1491, 1
        %v1493 = vadd.f32 %v1491, %v1492
        %v1494 = vrcp.pop %v1487
        %v1495 = vmul.f32 %v1493, %v1494
        %v1496 = vmul.f32 %v1483, %v1495
        %v1497 = vrot.slane %v1496, 4
        %v1498 = vmax.f32 %v1496, %v1497
        %v1499 = vrot.slane %v1498, 2
        %v1500 = vmax.f32 %v1498, %v1499
        %v1501 = vrot.slane %v1500, 1
        %v1502 = vmax.f32 %v1500, %v1501
        %v1503 = vsub.f32 %v1496, %v1502
        %v1504 = vmul.f32 %v1503, 1.442695
        %v1505 = vpow.pop %v1504
        %v1506 = vrot.slane %v1505, 4
        %v1507 = vadd.f32 %v1505, %v1506
        %v1508 = vrot.slane %v1507, 2
        %v1509 = vadd.f32 %v1507, %v1508
        %v1510 = vrot.slane %v1509, 1
        %v1511 = vadd.f32 %v1509, %v1510
        %v1512 = vrcp.pop %v1511
        %v1513 = vmul.f32 %v1505, %v1512
        %v1514 = vxor.u32 %v1496, 2147483648
        %v1515 = vmul.f32 %v1514, 1.442695
        %v1516 = vpow.pop %v1515
        %v1517 = vadd.f32 %v1516, 1.0
        %v1518 = vrcp.pop %v1517
        %v1519 = vmul.f32 1.0, %v1518
        %v1520 = vmul.f32 %v1513, %v1519
        %1521 = vmatprep.subr.mxu0 0.0
        %1522 = vmatpush1.msra.mxu0 %v638
        %1523 = vmatprep.subr.mxu0 0.0
        %1524 = vmatpush1.msra.mxu0 %v637
        %1525 = vmatprep.subr.mxu0 0.0
        %1526 = vmatpush1.msra.mxu0 %v636
        %1527 = vmatprep.subr.mxu0 0.0
        %1528 = vmatpush1.msra.mxu0 %v635
        %1529 = vmatprep.subr.mxu0 0.0
        %1530 = vmatpush1.msra.mxu0 %v634
        %1531 = vmatprep.subr.mxu0 0.0
        %1532 = vmatpush1.msra.mxu0 %v633
        %1533 = vmatprep.subr.mxu0 0.0
        %1534 = vmatpush1.msra.mxu0 %v632
        %1535 = vmatprep.subr.mxu0 0.0
        %1536 = vmatpush1.msra.mxu0 %v631
        %1537 = vmatprep.subr.mxu0 0.0
        %1538 = vmatpush1.msra.mxu0 %v630
        %1539 = vmatprep.subr.mxu0 0.0
        %1540 = vmatpush1.msra.mxu0 %v629
        %1541 = vmatprep.subr.mxu0 0.0
        %1542 = vmatpush1.msra.mxu0 %v628
        %1543 = vmatprep.subr.mxu0 0.0
        %1544 = vmatpush1.msra.mxu0 %v627
        %1545 = vmatprep.subr.mxu0 0.0
        %1546 = vmatpush1.msra.mxu0 %v626
        %1547 = vmatprep.subr.mxu0 0.0
        %1548 = vmatpush1.msra.mxu0 %v625
        %1549 = vmatprep.subr.mxu0 0.0
        %1550 = vmatpush1.msra.mxu0 %v624
        %1551 = vmatprep.subr.mxu0 0.0
        %1552 = vmatpush1.msra.mxu0 %v623
        %1553 = vmatprep.subr.mxu0 0.0
        %1554 = vmatpush2.msra.mxu0 0.0
        %1555 = vmatprep.subr.mxu0 0.0
        %1556 = vmatpush2.msra.mxu0 0.0
        %1557 = vmatprep.subr.mxu0 0.0
        %1558 = vmatpush2.msra.mxu0 0.0
        %1559 = vmatprep.subr.mxu0 0.0
        %1560 = vmatpush2.msra.mxu0 0.0
        %1561 = vmatprep.subr.mxu0 0.0
        %1562 = vmatpush2.msra.mxu0 0.0
        %1563 = vmatprep.subr.mxu0 0.0
        %1564 = vmatpush2.msra.mxu0 0.0
        %1565 = vmatprep.subr.mxu0 0.0
        %1566 = vmatpush2.msra.mxu0 0.0
        %1567 = vmatprep.subr.mxu0 0.0
        %1568 = vmatpush2.msra.mxu0 0.0
        %1569 = vmatprep.subr.mxu0 0.0
        %1570 = vmatpush2.msra.mxu0 0.0
        %1571 = vmatprep.subr.mxu0 0.0
        %1572 = vmatpush2.msra.mxu0 0.0
        %1573 = vmatprep.subr.mxu0 0.0
        %1574 = vmatpush2.msra.mxu0 0.0
        %1575 = vmatprep.subr.mxu0 0.0
        %1576 = vmatpush2.msra.mxu0 0.0
        %1577 = vmatprep.subr.mxu0 0.0
        %1578 = vmatpush2.msra.mxu0 0.0
        %1579 = vmatprep.subr.mxu0 0.0
        %1580 = vmatpush2.msra.mxu0 0.0
        %1581 = vmatprep.subr.mxu0 0.0
        %1582 = vmatpush2.msra.mxu0 0.0
        %1583 = vmatprep.subr.mxu0 0.0
        %1584 = vmatpush2.msra.mxu0 0.0
        %1585 = vmatprep.mubr.f32.mxu0 0.0
        %1586 = vmatmul.mubr.f32.gmra.mxu0 %v1520
        %v1587 = vpop.f32.mrf.mxu0
        %v1588 = vadd.f32 0.0, %v1587
        %v1589 = vpop.f32.mrf.mxu0
        %1590 = vdwg.mxu0
        %v1591 = vmul.f32 %v1588, 0.03125
        %v1592 = vsel %vm413, %v1591, 0.0
        %1593 = vadd.xlane.f32.xlu0 %v1592
        %v1594 = vpop.xlane.xlu0 %1593
        %v1596 = vlaneseq
        %v1597 = vand.u32 %v1596, 127
        %v1598 = vlaneseq
        %v1599 = vshrl.u32 %v1598, 7
        %v1600 = vsub.s32 %v1597, %v1599
        %v1601 = vrot.slane %v1594, %v1600
        %vm1603 = vcmask 57344
        %1604 = vst.msk [vmem:[%s367] sm:$0x1] %vm1603, %v1601
        %1605 = vadd.xlane.f32.xlu0 %v1520
        %v1606 = vpop.xlane.xlu0 %1605
        %v1607 = vrot.slane %v1606, 4
        %v1608 = vadd.f32 %v1606, %v1607
        %v1609 = vrot.slane %v1608, 2
        %v1610 = vadd.f32 %v1608, %v1609
        %v1611 = vrot.slane %v1610, 1
        %v1612 = vadd.f32 %v1610, %v1611
        %vm1613 = vcmask 0
        %1614 = vst.msk [vmem:[%s385] sm:$0x1] %vm1613, %v1612
        %s1615 = sand.u32 %s232, 1
        %s1616 = scalar_lea.sflag [#allocation3], %s1615
        %s1617 = sand.u32 %s232, 1
        %s1618 = scalar_lea.vmem [#allocation2], %s1617
        %p1619 = scmp.lt.s32.totalorder %s25, 1
        %s1620 = scalar_select %p1619, %s25, 1
        %s1621 = scalar_lea.vmem %s10, %s1620
        // Predicated region
        $region57: #{tpu_custom_call.1} parent=55 // pred_check
          %p1622 = pneg %p242
        $region58: #{tpu_custom_call.1} parent=55 // pred_check_branch
          %1624 = sbr.rel (%p1622) target = $region60
        $region59: #{tpu_custom_call.1} parent=55 // pred_region
          %s1626 = ssub.s32 16, 16
          %1627 = vsyncadd %s1616, %s1626
          %s1628 = smul.addr %s25, 16
          %s1629 = scalar_lea.hbm %s9, %s1628
          %s1631 = sshll.u32 %s1618, 4
          %s1632 = int_to_ptr.vmem [resolvable:$true] %s1631
          %1634 = dma.vmem_to_hbm [thread:$0]  %s1632, 16, %s1629, %s1616
        $region60: #{tpu_custom_call.1} parent=55 // pred_fallthru
          _
        // Predicated region
        $region61: #{tpu_custom_call.1} parent=55 // pred_check
          %p1635 = pneg %p268
        $region62: #{tpu_custom_call.1} parent=55 // pred_check_branch
          %1637 = sbr.rel (%p1635) target = $region64
        $region63: #{tpu_custom_call.1} parent=55 // pred_region
          _
        $region64: #{tpu_custom_call.1} parent=55 // pred_fallthru
          _
      $region56: #{tpu_custom_call.1} parent=5 // pred_fallthru
        _
      %p1638 = scmp.le.s32.totalorder 2, %s20
      // Predicated region
      $region65: #{tpu_custom_call.1} parent=5 // pred_check
        %p1639 = pneg %p1638
      $region66: #{tpu_custom_call.1} parent=5 // pred_check_branch
        %1641 = sbr.rel (%p1639) target = $region68
      $region67: #{tpu_custom_call.1} parent=5 // pred_region
        %s1642 = ssub.s32 %s20, 2
        // Predicated region
        $region69: #{tpu_custom_call.1} parent=67 // pred_check
          %p1643 = pneg %p248
        $region70: #{tpu_custom_call.1} parent=67 // pred_check_branch
          %1645 = sbr.rel (%p1643) target = $region72
        $region71: #{tpu_custom_call.1} parent=67 // pred_region
          %s1646 = sand.u32 %s233, 1
          %s1647 = scalar_lea.sflag [#allocation3], %s1646
          %s1648 = sand.u32 %s233, 1
          %s1649 = scalar_lea.vmem [#allocation2], %s1648
          %1650 = dma.done %s1647, 16
        $region72: #{tpu_custom_call.1} parent=67 // pred_fallthru
          _
        // Predicated region
        $region73: #{tpu_custom_call.1} parent=67 // pred_check
          %p1651 = pneg %p274
        $region74: #{tpu_custom_call.1} parent=67 // pred_check_branch
          %1653 = sbr.rel (%p1651) target = $region76
        $region75: #{tpu_custom_call.1} parent=67 // pred_region
          %p1654 = scmp.lt.s32.totalorder %s26, 1
          %s1655 = scalar_select %p1654, %s26, 1
          %s1656 = scalar_lea.vmem %s10, %s1655
        $region76: #{tpu_custom_call.1} parent=67 // pred_fallthru
          _
      $region68: #{tpu_custom_call.1} parent=5 // pred_fallthru
        _
    $region6: #{tpu_custom_call.1} parent=1 // loop_footer
      %s24 = sadd.s32 1, %s20
    $region7: #{tpu_custom_call.1} parent=1 // loop_footer_branch
      %19 = sbr.rel target = $region3
    $region8: #{tpu_custom_call.1} parent=1 // loop_exit
      _
    %1657 = vsyncpa [#allocation3], 1
    %s1658 = scalar_lea.sflag [#allocation3], 1
    %1659 = vsyncpa %s1658, 1

</llo_original>
